<compile_context>
chip_gen: v6e
topology: v6e:2x2x1
jax: 0.10.0
libtpu: 0.0.40
codegen_flags: <defaults>
</compile_context>

<pallas_src>
import functools

import jax
import jax.numpy as jnp
from jax.experimental import pallas as pl
from jax.experimental.pallas import tpu as pltpu  # noqa: F401  (kept for TPU-specific tuning hooks)


# ----------------------------------------------------------------------------
# Kernel 1: conv1-as-matmul + bias + ReLU + fused 2x2 max-pool
# ----------------------------------------------------------------------------
def _conv_relu_pool_kernel(w_ref, b_ref, p00_ref, p01_ref, p10_ref, p11_ref, o_ref):
    """pool(relu(conv+b)) == relu(max_over_pool_offsets(conv) + b).

    w:   (Cout, K)  bf16   flattened conv weight, K = Cin*kh*kw
    b:   (Cout, 1)  f32    bias
    pXY: (K, M)     bf16   im2col patches for pool offset (X, Y), M = B*Hp*Wp
    o:   (Cout, M)  bf16   pooled activations (lane-dense M axis)
    """
    w = w_ref[...]
    acc = jnp.dot(w, p00_ref[...], preferred_element_type=jnp.float32)
    acc = jnp.maximum(acc, jnp.dot(w, p01_ref[...], preferred_element_type=jnp.float32))
    acc = jnp.maximum(acc, jnp.dot(w, p10_ref[...], preferred_element_type=jnp.float32))
    acc = jnp.maximum(acc, jnp.dot(w, p11_ref[...], preferred_element_type=jnp.float32))
    o_ref[...] = jnp.maximum(acc + b_ref[...], 0.0).astype(o_ref.dtype)


def conv_relu_pool_block(w_mat, bias_col, patch_mats):
    cout, k = w_mat.shape
    m = patch_mats[0].shape[1]
    return pl.pallas_call(
        _conv_relu_pool_kernel,
        out_shape=jax.ShapeDtypeStruct((cout, m), jnp.bfloat16),
        in_specs=[pl.BlockSpec((cout, k), lambda: (0, 0)),
                  pl.BlockSpec((cout, 1), lambda: (0, 0))]
                 + [pl.BlockSpec((k, m), lambda: (0, 0))] * 4,
        out_specs=pl.BlockSpec((cout, m), lambda: (0, 0)),
    )(w_mat, bias_col, *patch_mats)


# ----------------------------------------------------------------------------
# Kernel 2: conv2+ReLU+pool fused with the NCHW flatten and fc1->fc2->fc3
# ----------------------------------------------------------------------------
def _conv2_fc_kernel(w2_ref, b2_ref, p00_ref, p01_ref, p10_ref, p11_ref,
                     w3_ref, b3_ref, w4_ref, b4_ref, w5_ref, b5_ref,
                     o_ref, *, bsz, s2):
    """Patch columns are ordered (spatial s, batch b); the fc chain runs in
    transposed (features, batch) orientation, so the x.view(-1, 400) flatten
    is just s2 static lane slices concatenated along the row axis (rows then
    ordered (s, c)), matched by a pre-permuted / zero-padded w3. All conv2 and
    fc intermediates stay in VMEM.
    """
    w2 = w2_ref[...]
    acc = jnp.dot(w2, p00_ref[...], preferred_element_type=jnp.float32)
    acc = jnp.maximum(acc, jnp.dot(w2, p01_ref[...], preferred_element_type=jnp.float32))
    acc = jnp.maximum(acc, jnp.dot(w2, p10_ref[...], preferred_element_type=jnp.float32))
    acc = jnp.maximum(acc, jnp.dot(w2, p11_ref[...], preferred_element_type=jnp.float32))
    a2 = jnp.maximum(acc + b2_ref[...], 0.0).astype(jnp.bfloat16)        # (16, s2*bsz)

    # Fold in x.view(-1, 16*5*5): fc input rows ordered (s, c), columns = batch.
    fc_in = jnp.concatenate([a2[:, s * bsz:(s + 1) * bsz] for s in range(s2)],
                            axis=0)                                       # (16*s2, bsz)

    h = jnp.dot(w3_ref[...], fc_in, preferred_element_type=jnp.float32)   # (128, B)
    h = jnp.maximum(h + b3_ref[...], 0.0)
    h = jnp.dot(w4_ref[...], h.astype(jnp.bfloat16), preferred_element_type=jnp.float32)
    h = jnp.maximum(h + b4_ref[...], 0.0)
    h = jnp.dot(w5_ref[...], h.astype(jnp.bfloat16), preferred_element_type=jnp.float32)
    o_ref[...] = (h + b5_ref[...]).astype(o_ref.dtype)                    # (10, B)


def conv2_fc_block(pk, patch_mats, bsz, s2):
    k2, m2 = patch_mats[0].shape
    n_cls = pk["w5"].shape[0]

    def full(a):
        return pl.BlockSpec(a.shape, lambda: (0, 0))

    kernel = functools.partial(_conv2_fc_kernel, bsz=bsz, s2=s2)
    return pl.pallas_call(
        kernel,
        out_shape=jax.ShapeDtypeStruct((n_cls, bsz), jnp.float32),
        in_specs=[full(pk["w2"]), full(pk["b2"])]
                 + [pl.BlockSpec((k2, m2), lambda: (0, 0))] * 4
                 + [full(pk["w3"]), full(pk["b3"]),
                    full(pk["w4"]), full(pk["b4"]),
                    full(pk["w5"]), full(pk["b5"])],
        out_specs=pl.BlockSpec((n_cls, bsz), lambda: (0, 0)),
    )(pk["w2"], pk["b2"], *patch_mats,
      pk["w3"], pk["b3"], pk["w4"], pk["b4"], pk["w5"], pk["b5"])


# ----------------------------------------------------------------------------
# im2col glue (plain JAX strided slices) — one patch matrix per 2x2 pool offset
# ----------------------------------------------------------------------------
def im2col_pooled(xc, kh, kw, pool=2, batch_major=True):
    """xc: (C, B, H, W) channels-first activation.

    Returns 4 bf16 patch matrices of shape (C*kh*kw, B*Hp*Wp), one per pool
    offset (p, q), plus (Hp, Wp). Row order (c, i, j) matches the PyTorch
    conv-weight flatten; column order is (b, oh, ow) if batch_major else
    (oh, ow, b).
    """
    c, b, h, w = xc.shape
    ho, wo = h - kh + 1, w - kw + 1        # conv output spatial
    hp, wp = ho // pool, wo // pool        # pooled output spatial
    mats = []
    for p in range(pool):
        for q in range(pool):
            cols = []
            for i in range(kh):
                for j in range(kw):
                    r0, c0 = p + i, q + j
                    sl = xc[:, :,
                            r0:r0 + pool * hp - 1:pool,
                            c0:c0 + pool * wp - 1:pool]          # (C, B, Hp, Wp)
                    cols.append(sl)
            pm = jnp.stack(cols, axis=1)                          # (C, kh*kw, B, Hp, Wp)
            if not batch_major:
                pm = pm.transpose(0, 1, 3, 4, 2)                  # (C, kh*kw, Hp, Wp, B)
            mats.append(pm.reshape(c * kh * kw, b * hp * wp).astype(jnp.bfloat16))
    return mats, (hp, wp)


# ----------------------------------------------------------------------------
# Parameters
# ----------------------------------------------------------------------------
def init_params(key):
    """Synthetic parameters in the original PyTorch layouts."""
    ks = jax.random.split(key, 10)
    scale = 0.1
    return {
        "w1": jax.random.normal(ks[0], (6, 3, 5, 5), jnp.float32) * scale,
        "b1": jax.random.normal(ks[1], (6,), jnp.float32) * scale,
        "w2": jax.random.normal(ks[2], (16, 6, 5, 5), jnp.float32) * scale,
        "b2": jax.random.normal(ks[3], (16,), jnp.float32) * scale,
        "w3": jax.random.normal(ks[4], (120, 16 * 5 * 5), jnp.float32) * scale,
        "b3": jax.random.normal(ks[5], (120,), jnp.float32) * scale,
        "w4": jax.random.normal(ks[6], (84, 120), jnp.float32) * scale,
        "b4": jax.random.normal(ks[7], (84,), jnp.float32) * scale,
        "w5": jax.random.normal(ks[8], (10, 84), jnp.float32) * scale,
        "b5": jax.random.normal(ks[9], (10,), jnp.float32) * scale,
    }


def prepare_params(p):
    """One-time conversion to kernel-friendly layouts (no per-forward transposes).

    fc1 weight columns are permuted from PyTorch's (c, s) flatten order to the
    kernel's (s, c) fc-input row order; fc hidden dims are zero-padded to 128.
    """
    w3 = p["w3"].reshape(120, 16, 25).transpose(0, 2, 1).reshape(120, 400)
    w3 = jnp.pad(w3, ((0, 8), (0, 0)))            # (120, 400) -> (128, 400)
    w4 = jnp.pad(p["w4"], ((0, 44), (0, 8)))      # (84, 120)  -> (128, 128)
    w5 = jnp.pad(p["w5"], ((0, 0), (0, 44)))      # (10, 84)   -> (10, 128)
    return {
        "w1": p["w1"].reshape(6, 3 * 5 * 5).astype(jnp.bfloat16),    # (Cout, K)
        "b1": p["b1"].reshape(6, 1).astype(jnp.float32),
        "w2": p["w2"].reshape(16, 6 * 5 * 5).astype(jnp.bfloat16),   # (Cout, K)
        "b2": p["b2"].reshape(16, 1).astype(jnp.float32),
        "w3": w3.astype(jnp.bfloat16),
        "b3": jnp.pad(p["b3"], (0, 8)).reshape(128, 1).astype(jnp.float32),
        "w4": w4.astype(jnp.bfloat16),
        "b4": jnp.pad(p["b4"], (0, 44)).reshape(128, 1).astype(jnp.float32),
        "w5": w5.astype(jnp.bfloat16),
        "b5": p["b5"].reshape(10, 1).astype(jnp.float32),
    }


# ----------------------------------------------------------------------------
# Forward pass (mirrors CNN.forward), 2 pallas_calls total
# ----------------------------------------------------------------------------
def cnn_forward(pk, x):
    bsz = x.shape[0]
    xc = jnp.transpose(x, (1, 0, 2, 3))                       # (3, B, 32, 32)

    # x = pool(relu(conv1(x)))  -- one fused kernel, bf16 lane-dense output
    mats1, (h1, w1) = im2col_pooled(xc, 5, 5, batch_major=True)    # 4 x (75, B*196)
    a1 = conv_relu_pool_block(pk["w1"], pk["b1"], mats1)           # (6, B*196) bf16
    a1 = a1.reshape(6, bsz, h1, w1)                                # channels-first

    # x = pool(relu(conv2(x))); x = x.view(-1, 400); fc1/fc2/fc3 -- one fused kernel
    mats2, (h2, w2) = im2col_pooled(a1, 5, 5, batch_major=False)   # 4 x (150, 25*B)
    logits_t = conv2_fc_block(pk, mats2, bsz, h2 * w2)             # (10, B)
    return logits_t.T                                              # (B, 10)


# ----------------------------------------------------------------------------
# Pure-JAX reference (f32) for a sanity check
# ----------------------------------------------------------------------------
def reference_forward(p, x):
    def conv(x, w, b):
        y = jax.lax.conv_general_dilated(
            x, w, window_strides=(1, 1), padding="VALID",
            dimension_numbers=("NCHW", "OIHW", "NCHW"))
        return jax.nn.relu(y + b[None, :, None, None])

    def pool(x):
        bsz, c, h, w = x.shape
        return x.reshape(bsz, c, h // 2, 2, w // 2, 2).max(axis=(3, 5))

    x = pool(conv(x, p["w1"], p["b1"]))
    x = pool(conv(x, p["w2"], p["b2"]))
    x = x.reshape(x.shape[0], -1)
    x = jax.nn.relu(x @ p["w3"].T + p["b3"])
    x = jax.nn.relu(x @ p["w4"].T + p["b4"])
    return x @ p["w5"].T + p["b5"]


if __name__ == "__main__":
    key = jax.random.PRNGKey(0)
    k_params, k_x = jax.random.split(key)
    params = init_params(k_params)
    pk = prepare_params(params)
    # Input must be 32x32 so that fc1 sees 16*5*5 features (as in the module).
    x = jax.random.normal(k_x, (2, 3, 32, 32), jnp.float32)

    fwd = jax.jit(cnn_forward)
    out = jax.block_until_ready(fwd(pk, x))

    assert out.shape == (2, 10), out.shape
    assert bool(jnp.all(jnp.isfinite(out)))

    # Loose sanity check vs f32 reference (kernel uses bf16 MXU operands).
    ref = reference_forward(params, x)
    max_err = float(jnp.max(jnp.abs(out - ref)))
    assert max_err < 0.3, f"mismatch vs reference: max abs err {max_err}"

    print("KERNEL_OK")
</pallas_src>

<mosaic_0001>
module attributes {stable_mosaic.version = 11 : i64} {
  func.func @_conv_relu_pool_kernel(%arg0: memref<6x75xbf16, #tpu.memory_space<vmem>>, %arg1: memref<6x1xf32, #tpu.memory_space<vmem>>, %arg2: memref<75x392xbf16, #tpu.memory_space<vmem>>, %arg3: memref<75x392xbf16, #tpu.memory_space<vmem>>, %arg4: memref<75x392xbf16, #tpu.memory_space<vmem>>, %arg5: memref<75x392xbf16, #tpu.memory_space<vmem>>, %arg6: memref<6x392xbf16, #tpu.memory_space<vmem>>) attributes {dimension_semantics = [], scalar_prefetch = 0 : i64, scratch_operands = 0 : i64, tpu.core_type = #tpu.core_type<tc>} {
    %c0 = arith.constant 0 : index
    %c0_0 = arith.constant 0 : index
    %0 = vector.load %arg0[%c0, %c0_0] : memref<6x75xbf16, #tpu.memory_space<vmem>>, vector<6x75xbf16>
    %c0_1 = arith.constant 0 : index
    %c0_2 = arith.constant 0 : index
    %1 = vector.load %arg2[%c0_1, %c0_2] : memref<75x392xbf16, #tpu.memory_space<vmem>>, vector<75x392xbf16>
    %cst = arith.constant dense<0.000000e+00> : vector<6x392xf32>
    %2 = tpu.matmul %0, %1, %cst {dimension_numbers = #tpu.dot_dimension_numbers<[1], [0], [0], [1], [0, 0, 1, 1], [], []>} : vector<6x75xbf16>, vector<75x392xbf16>, vector<6x392xf32> -> vector<6x392xf32>
    %c0_3 = arith.constant 0 : index
    %c0_4 = arith.constant 0 : index
    %3 = vector.load %arg3[%c0_3, %c0_4] : memref<75x392xbf16, #tpu.memory_space<vmem>>, vector<75x392xbf16>
    %cst_5 = arith.constant dense<0.000000e+00> : vector<6x392xf32>
    %4 = tpu.matmul %0, %3, %cst_5 {dimension_numbers = #tpu.dot_dimension_numbers<[1], [0], [0], [1], [0, 0, 1, 1], [], []>} : vector<6x75xbf16>, vector<75x392xbf16>, vector<6x392xf32> -> vector<6x392xf32>
    %5 = arith.maximumf %2, %4 : vector<6x392xf32>
    %c0_6 = arith.constant 0 : index
    %c0_7 = arith.constant 0 : index
    %6 = vector.load %arg4[%c0_6, %c0_7] : memref<75x392xbf16, #tpu.memory_space<vmem>>, vector<75x392xbf16>
    %cst_8 = arith.constant dense<0.000000e+00> : vector<6x392xf32>
    %7 = tpu.matmul %0, %6, %cst_8 {dimension_numbers = #tpu.dot_dimension_numbers<[1], [0], [0], [1], [0, 0, 1, 1], [], []>} : vector<6x75xbf16>, vector<75x392xbf16>, vector<6x392xf32> -> vector<6x392xf32>
    %8 = arith.maximumf %5, %7 : vector<6x392xf32>
    %c0_9 = arith.constant 0 : index
    %c0_10 = arith.constant 0 : index
    %9 = vector.load %arg5[%c0_9, %c0_10] : memref<75x392xbf16, #tpu.memory_space<vmem>>, vector<75x392xbf16>
    %cst_11 = arith.constant dense<0.000000e+00> : vector<6x392xf32>
    %10 = tpu.matmul %0, %9, %cst_11 {dimension_numbers = #tpu.dot_dimension_numbers<[1], [0], [0], [1], [0, 0, 1, 1], [], []>} : vector<6x75xbf16>, vector<75x392xbf16>, vector<6x392xf32> -> vector<6x392xf32>
    %11 = arith.maximumf %8, %10 : vector<6x392xf32>
    %c0_12 = arith.constant 0 : index
    %c0_13 = arith.constant 0 : index
    %12 = vector.load %arg1[%c0_12, %c0_13] : memref<6x1xf32, #tpu.memory_space<vmem>>, vector<6x1xf32>
    %13 = vector.broadcast %12 : vector<6x1xf32> to vector<6x392xf32>
    %14 = arith.addf %11, %13 : vector<6x392xf32>
    %cst_14 = arith.constant 0.000000e+00 : f32
    %15 = vector.broadcast %cst_14 : f32 to vector<6x392xf32>
    %16 = arith.maximumf %14, %15 : vector<6x392xf32>
    %17 = arith.truncf %16 : vector<6x392xf32> to vector<6x392xbf16>
    %c0_15 = arith.constant 0 : index
    %c0_16 = arith.constant 0 : index
    %18 = vector.load %arg6[%c0_15, %c0_16] : memref<6x392xbf16, #tpu.memory_space<vmem>>, vector<6x392xbf16>
    tpu.vector_store %arg6[%c0_15, %c0_16], %17 {strides = array<i32>} : memref<6x392xbf16, #tpu.memory_space<vmem>>, vector<6x392xbf16>,
    return
  }
}

module attributes {stable_mosaic.version = 11 : i64} {
  func.func @_conv2_fc_kernel(%arg0: memref<16x150xbf16, #tpu.memory_space<vmem>>, %arg1: memref<16x1xf32, #tpu.memory_space<vmem>>, %arg2: memref<150x50xbf16, #tpu.memory_space<vmem>>, %arg3: memref<150x50xbf16, #tpu.memory_space<vmem>>, %arg4: memref<150x50xbf16, #tpu.memory_space<vmem>>, %arg5: memref<150x50xbf16, #tpu.memory_space<vmem>>, %arg6: memref<128x400xbf16, #tpu.memory_space<vmem>>, %arg7: memref<128x1xf32, #tpu.memory_space<vmem>>, %arg8: memref<128x128xbf16, #tpu.memory_space<vmem>>, %arg9: memref<128x1xf32, #tpu.memory_space<vmem>>, %arg10: memref<10x128xbf16, #tpu.memory_space<vmem>>, %arg11: memref<10x1xf32, #tpu.memory_space<vmem>>, %arg12: memref<10x2xf32, #tpu.memory_space<vmem>>) attributes {dimension_semantics = [], scalar_prefetch = 0 : i64, scratch_operands = 0 : i64, tpu.core_type = #tpu.core_type<tc>} {
    %c0 = arith.constant 0 : index
    %c0_0 = arith.constant 0 : index
    %0 = vector.load %arg0[%c0, %c0_0] : memref<16x150xbf16, #tpu.memory_space<vmem>>, vector<16x150xbf16>
    %c0_1 = arith.constant 0 : index
    %c0_2 = arith.constant 0 : index
    %1 = vector.load %arg2[%c0_1, %c0_2] : memref<150x50xbf16, #tpu.memory_space<vmem>>, vector<150x50xbf16>
    %cst = arith.constant dense<0.000000e+00> : vector<16x50xf32>
    %2 = tpu.matmul %0, %1, %cst {dimension_numbers = #tpu.dot_dimension_numbers<[1], [0], [0], [1], [0, 0, 1, 1], [], []>} : vector<16x150xbf16>, vector<150x50xbf16>, vector<16x50xf32> -> vector<16x50xf32>
    %c0_3 = arith.constant 0 : index
    %c0_4 = arith.constant 0 : index
    %3 = vector.load %arg3[%c0_3, %c0_4] : memref<150x50xbf16, #tpu.memory_space<vmem>>, vector<150x50xbf16>
    %cst_5 = arith.constant dense<0.000000e+00> : vector<16x50xf32>
    %4 = tpu.matmul %0, %3, %cst_5 {dimension_numbers = #tpu.dot_dimension_numbers<[1], [0], [0], [1], [0, 0, 1, 1], [], []>} : vector<16x150xbf16>, vector<150x50xbf16>, vector<16x50xf32> -> vector<16x50xf32>
    %5 = arith.maximumf %2, %4 : vector<16x50xf32>
    %c0_6 = arith.constant 0 : index
    %c0_7 = arith.constant 0 : index
    %6 = vector.load %arg4[%c0_6, %c0_7] : memref<150x50xbf16, #tpu.memory_space<vmem>>, vector<150x50xbf16>
    %cst_8 = arith.constant dense<0.000000e+00> : vector<16x50xf32>
    %7 = tpu.matmul %0, %6, %cst_8 {dimension_numbers = #tpu.dot_dimension_numbers<[1], [0], [0], [1], [0, 0, 1, 1], [], []>} : vector<16x150xbf16>, vector<150x50xbf16>, vector<16x50xf32> -> vector<16x50xf32>
    %8 = arith.maximumf %5, %7 : vector<16x50xf32>
    %c0_9 = arith.constant 0 : index
    %c0_10 = arith.constant 0 : index
    %9 = vector.load %arg5[%c0_9, %c0_10] : memref<150x50xbf16, #tpu.memory_space<vmem>>, vector<150x50xbf16>
    %cst_11 = arith.constant dense<0.000000e+00> : vector<16x50xf32>
    %10 = tpu.matmul %0, %9, %cst_11 {dimension_numbers = #tpu.dot_dimension_numbers<[1], [0], [0], [1], [0, 0, 1, 1], [], []>} : vector<16x150xbf16>, vector<150x50xbf16>, vector<16x50xf32> -> vector<16x50xf32>
    %11 = arith.maximumf %8, %10 : vector<16x50xf32>
    %c0_12 = arith.constant 0 : index
    %c0_13 = arith.constant 0 : index
    %12 = vector.load %arg1[%c0_12, %c0_13] : memref<16x1xf32, #tpu.memory_space<vmem>>, vector<16x1xf32>
    %13 = vector.broadcast %12 : vector<16x1xf32> to vector<16x50xf32>
    %14 = arith.addf %11, %13 : vector<16x50xf32>
    %cst_14 = arith.constant 0.000000e+00 : f32
    %15 = vector.broadcast %cst_14 : f32 to vector<16x50xf32>
    %16 = arith.maximumf %14, %15 : vector<16x50xf32>
    %17 = arith.truncf %16 : vector<16x50xf32> to vector<16x50xbf16>
    %18 = vector.extract_strided_slice %17 {offsets = [0, 0], sizes = [16, 2], strides = [1, 1]} : vector<16x50xbf16> to vector<16x2xbf16>
    %19 = vector.extract_strided_slice %17 {offsets = [0, 2], sizes = [16, 2], strides = [1, 1]} : vector<16x50xbf16> to vector<16x2xbf16>
    %20 = vector.extract_strided_slice %17 {offsets = [0, 4], sizes = [16, 2], strides = [1, 1]} : vector<16x50xbf16> to vector<16x2xbf16>
    %21 = vector.extract_strided_slice %17 {offsets = [0, 6], sizes = [16, 2], strides = [1, 1]} : vector<16x50xbf16> to vector<16x2xbf16>
    %22 = vector.extract_strided_slice %17 {offsets = [0, 8], sizes = [16, 2], strides = [1, 1]} : vector<16x50xbf16> to vector<16x2xbf16>
    %23 = vector.extract_strided_slice %17 {offsets = [0, 10], sizes = [16, 2], strides = [1, 1]} : vector<16x50xbf16> to vector<16x2xbf16>
    %24 = vector.extract_strided_slice %17 {offsets = [0, 12], sizes = [16, 2], strides = [1, 1]} : vector<16x50xbf16> to vector<16x2xbf16>
    %25 = vector.extract_strided_slice %17 {offsets = [0, 14], sizes = [16, 2], strides = [1, 1]} : vector<16x50xbf16> to vector<16x2xbf16>
    %26 = vector.extract_strided_slice %17 {offsets = [0, 16], sizes = [16, 2], strides = [1, 1]} : vector<16x50xbf16> to vector<16x2xbf16>
    %27 = vector.extract_strided_slice %17 {offsets = [0, 18], sizes = [16, 2], strides = [1, 1]} : vector<16x50xbf16> to vector<16x2xbf16>
    %28 = vector.extract_strided_slice %17 {offsets = [0, 20], sizes = [16, 2], strides = [1, 1]} : vector<16x50xbf16> to vector<16x2xbf16>
    %29 = vector.extract_strided_slice %17 {offsets = [0, 22], sizes = [16, 2], strides = [1, 1]} : vector<16x50xbf16> to vector<16x2xbf16>
    %30 = vector.extract_strided_slice %17 {offsets = [0, 24], sizes = [16, 2], strides = [1, 1]} : vector<16x50xbf16> to vector<16x2xbf16>
    %31 = vector.extract_strided_slice %17 {offsets = [0, 26], sizes = [16, 2], strides = [1, 1]} : vector<16x50xbf16> to vector<16x2xbf16>
    %32 = vector.extract_strided_slice %17 {offsets = [0, 28], sizes = [16, 2], strides = [1, 1]} : vector<16x50xbf16> to vector<16x2xbf16>
    %33 = vector.extract_strided_slice %17 {offsets = [0, 30], sizes = [16, 2], strides = [1, 1]} : vector<16x50xbf16> to vector<16x2xbf16>
    %34 = vector.extract_strided_slice %17 {offsets = [0, 32], sizes = [16, 2], strides = [1, 1]} : vector<16x50xbf16> to vector<16x2xbf16>
    %35 = vector.extract_strided_slice %17 {offsets = [0, 34], sizes = [16, 2], strides = [1, 1]} : vector<16x50xbf16> to vector<16x2xbf16>
    %36 = vector.extract_strided_slice %17 {offsets = [0, 36], sizes = [16, 2], strides = [1, 1]} : vector<16x50xbf16> to vector<16x2xbf16>
    %37 = vector.extract_strided_slice %17 {offsets = [0, 38], sizes = [16, 2], strides = [1, 1]} : vector<16x50xbf16> to vector<16x2xbf16>
    %38 = vector.extract_strided_slice %17 {offsets = [0, 40], sizes = [16, 2], strides = [1, 1]} : vector<16x50xbf16> to vector<16x2xbf16>
    %39 = vector.extract_strided_slice %17 {offsets = [0, 42], sizes = [16, 2], strides = [1, 1]} : vector<16x50xbf16> to vector<16x2xbf16>
    %40 = vector.extract_strided_slice %17 {offsets = [0, 44], sizes = [16, 2], strides = [1, 1]} : vector<16x50xbf16> to vector<16x2xbf16>
    %41 = vector.extract_strided_slice %17 {offsets = [0, 46], sizes = [16, 2], strides = [1, 1]} : vector<16x50xbf16> to vector<16x2xbf16>
    %42 = vector.extract_strided_slice %17 {offsets = [0, 48], sizes = [16, 2], strides = [1, 1]} : vector<16x50xbf16> to vector<16x2xbf16>
    %43 = tpu.concatenate %18, %19, %20, %21, %22, %23, %24, %25, %26, %27, %28, %29, %30, %31, %32, %33 in 0 : vector<16x2xbf16>, vector<16x2xbf16>, vector<16x2xbf16>, vector<16x2xbf16>, vector<16x2xbf16>, vector<16x2xbf16>, vector<16x2xbf16>, vector<16x2xbf16>, vector<16x2xbf16>, vector<16x2xbf16>, vector<16x2xbf16>, vector<16x2xbf16>, vector<16x2xbf16>, vector<16x2xbf16>, vector<16x2xbf16>, vector<16x2xbf16> -> vector<256x2xbf16>
    %44 = tpu.concatenate %34, %35, %36, %37, %38, %39, %40, %41, %42 in 0 : vector<16x2xbf16>, vector<16x2xbf16>, vector<16x2xbf16>, vector<16x2xbf16>, vector<16x2xbf16>, vector<16x2xbf16>, vector<16x2xbf16>, vector<16x2xbf16>, vector<16x2xbf16> -> vector<144x2xbf16>
    %45 = tpu.concatenate %43, %44 in 0 : vector<256x2xbf16>, vector<144x2xbf16> -> vector<400x2xbf16>
    %c0_15 = arith.constant 0 : index
    %c0_16 = arith.constant 0 : index
    %46 = vector.load %arg6[%c0_15, %c0_16] : memref<128x400xbf16, #tpu.memory_space<vmem>>, vector<128x400xbf16>
    %cst_17 = arith.constant dense<0.000000e+00> : vector<128x2xf32>
    %47 = tpu.matmul %46, %45, %cst_17 {dimension_numbers = #tpu.dot_dimension_numbers<[1], [0], [0], [1], [0, 0, 1, 1], [], []>} : vector<128x400xbf16>, vector<400x2xbf16>, vector<128x2xf32> -> vector<128x2xf32>
    %c0_18 = arith.constant 0 : index
    %c0_19 = arith.constant 0 : index
    %48 = vector.load %arg7[%c0_18, %c0_19] : memref<128x1xf32, #tpu.memory_space<vmem>>, vector<128x1xf32>
    %49 = vector.broadcast %48 : vector<128x1xf32> to vector<128x2xf32>
    %50 = arith.addf %47, %49 : vector<128x2xf32>
    %cst_20 = arith.constant 0.000000e+00 : f32
    %51 = vector.broadcast %cst_20 : f32 to vector<128x2xf32>
    %52 = arith.maximumf %50, %51 : vector<128x2xf32>
    %c0_21 = arith.constant 0 : index
    %c0_22 = arith.constant 0 : index
    %53 = vector.load %arg8[%c0_21, %c0_22] : memref<128x128xbf16, #tpu.memory_space<vmem>>, vector<128x128xbf16>
    %54 = arith.truncf %52 : vector<128x2xf32> to vector<128x2xbf16>
    %cst_23 = arith.constant dense<0.000000e+00> : vector<128x2xf32>
    %55 = tpu.matmul %53, %54, %cst_23 {dimension_numbers = #tpu.dot_dimension_numbers<[1], [0], [0], [1], [0, 0, 1, 1], [], []>} : vector<128x128xbf16>, vector<128x2xbf16>, vector<128x2xf32> -> vector<128x2xf32>
    %c0_24 = arith.constant 0 : index
    %c0_25 = arith.constant 0 : index
    %56 = vector.load %arg9[%c0_24, %c0_25] : memref<128x1xf32, #tpu.memory_space<vmem>>, vector<128x1xf32>
    %57 = vector.broadcast %56 : vector<128x1xf32> to vector<128x2xf32>
    %58 = arith.addf %55, %57 : vector<128x2xf32>
    %cst_26 = arith.constant 0.000000e+00 : f32
    %59 = vector.broadcast %cst_26 : f32 to vector<128x2xf32>
    %60 = arith.maximumf %58, %59 : vector<128x2xf32>
    %c0_27 = arith.constant 0 : index
    %c0_28 = arith.constant 0 : index
    %61 = vector.load %arg10[%c0_27, %c0_28] : memref<10x128xbf16, #tpu.memory_space<vmem>>, vector<10x128xbf16>
    %62 = arith.truncf %60 : vector<128x2xf32> to vector<128x2xbf16>
    %cst_29 = arith.constant dense<0.000000e+00> : vector<10x2xf32>
    %63 = tpu.matmul %61, %62, %cst_29 {dimension_numbers = #tpu.dot_dimension_numbers<[1], [0], [0], [1], [0, 0, 1, 1], [], []>} : vector<10x128xbf16>, vector<128x2xbf16>, vector<10x2xf32> -> vector<10x2xf32>
    %c0_30 = arith.constant 0 : index
    %c0_31 = arith.constant 0 : index
    %64 = vector.load %arg11[%c0_30, %c0_31] : memref<10x1xf32, #tpu.memory_space<vmem>>, vector<10x1xf32>
    %65 = vector.broadcast %64 : vector<10x1xf32> to vector<10x2xf32>
    %66 = arith.addf %63, %65 : vector<10x2xf32>
    %c0_32 = arith.constant 0 : index
    %c0_33 = arith.constant 0 : index
    %67 = vector.load %arg12[%c0_32, %c0_33] : memref<10x2xf32, #tpu.memory_space<vmem>>, vector<10x2xf32>
    tpu.vector_store %arg12[%c0_32, %c0_33], %66 {strides = array<i32>} : memref<10x2xf32, #tpu.memory_space<vmem>>, vector<10x2xf32>,
    return
  }
}

</mosaic_0001>

<llo_original>
// kernel: cnn_forward.2
$region0: #{cnn_forward.2}
  #allocation0 [shape = 'u32[]', space=smem, size = 0x4, offset = 0x4, fixed_abs, tag = 'smem constant byte address 0x4 - core index']
  #allocation1 [shape = 'u32[144,128]{1,0:T(1,128)}', space=vmem, size = 0x12000, scoped, tag = 'internal scratch']
  %s0 = inlined_call_operand.vmem [shape: bf16[6,75], index: 0, kind: input, shape index: {}]
  %s1 = inlined_call_operand.vmem [shape: f32[6,1], index: 1, kind: input, shape index: {}]
  %s2 = inlined_call_operand.vmem [shape: bf16[75,392], index: 2, kind: input, shape index: {}]
  %s3 = inlined_call_operand.vmem [shape: bf16[75,392], index: 3, kind: input, shape index: {}]
  %s4 = inlined_call_operand.vmem [shape: bf16[75,392], index: 4, kind: input, shape index: {}]
  %s5 = inlined_call_operand.vmem [shape: bf16[75,392], index: 5, kind: input, shape index: {}]
  %s6 = inlined_call_operand.vmem [shape: bf16[6,392], index: 6, kind: output, shape index: {}]
  %s7 = sld [smem:[#allocation0]]
  $region34: #{cnn_forward.2} parent=0
    _
  %s9 = ssub.s32 1, %s7
  %s10 = scalar_select 0, %s9, %s7
  // Predicated region
  $region2: #{cnn_forward.2} parent=0 // pred_check
    _
  $region3: #{cnn_forward.2} parent=0 // pred_check_branch
    %12 = sbr.rel (0) target = $region5
  $region4: #{cnn_forward.2} parent=0 // pred_region
    _
  $region5: #{cnn_forward.2} parent=0 // pred_fallthru
    _
  // Predicated region
  $region6: #{cnn_forward.2} parent=0 // pred_check
    _
  $region7: #{cnn_forward.2} parent=0 // pred_check_branch
    %14 = sbr.rel (0) target = $region9
  $region8: #{cnn_forward.2} parent=0 // pred_region
    _
  $region9: #{cnn_forward.2} parent=0 // pred_fallthru
    _
  // Predicated region
  $region10: #{cnn_forward.2} parent=0 // pred_check
    _
  $region11: #{cnn_forward.2} parent=0 // pred_check_branch
    %16 = sbr.rel (0) target = $region13
  $region12: #{cnn_forward.2} parent=0 // pred_region
    _
  $region13: #{cnn_forward.2} parent=0 // pred_fallthru
    _
  // Predicated region
  $region14: #{cnn_forward.2} parent=0 // pred_check
    _
  $region15: #{cnn_forward.2} parent=0 // pred_check_branch
    %18 = sbr.rel (0) target = $region17
  $region16: #{cnn_forward.2} parent=0 // pred_region
    _
  $region17: #{cnn_forward.2} parent=0 // pred_fallthru
    _
  // Predicated region
  $region18: #{cnn_forward.2} parent=0 // pred_check
    _
  $region19: #{cnn_forward.2} parent=0 // pred_check_branch
    %20 = sbr.rel (0) target = $region21
  $region20: #{cnn_forward.2} parent=0 // pred_region
    _
  $region21: #{cnn_forward.2} parent=0 // pred_fallthru
    _
  // Predicated region
  $region22: #{cnn_forward.2} parent=0 // pred_check
    _
  $region23: #{cnn_forward.2} parent=0 // pred_check_branch
    %22 = sbr.rel (0) target = $region25
  $region24: #{cnn_forward.2} parent=0 // pred_region
    _
  $region25: #{cnn_forward.2} parent=0 // pred_fallthru
    _
  %v24 = vld [vmem:[%s0] sm:$0x7]
  %v25 = vld [vmem:[%s2] sm:$0xff]
  %v26 = vld [vmem:[%s2 + $0x8] sm:$0xff]
  %v27 = vld [vmem:[%s2 + $0x10] sm:$0xff]
  %v28 = vld [vmem:[%s2 + $0x18] sm:$0xff]
  %v29 = vld [vmem:[%s2 + $0x20] sm:$0xff]
  %v30 = vld [vmem:[%s2 + $0x28] sm:$0xff]
  %v31 = vld [vmem:[%s2 + $0x30] sm:$0xff]
  %v32 = vld [vmem:[%s2 + $0x38] sm:$0xff]
  %v33 = vld [vmem:[%s2 + $0x40] sm:$0xff]
  %v34 = vld [vmem:[%s2 + $0x48] sm:$0xff]
  %v35 = vld [vmem:[%s2 + $0x50] sm:$0xff]
  %v36 = vld [vmem:[%s2 + $0x58] sm:$0xff]
  %v37 = vld [vmem:[%s2 + $0x60] sm:$0xff]
  %v38 = vld [vmem:[%s2 + $0x68] sm:$0xff]
  %v39 = vld [vmem:[%s2 + $0x70] sm:$0xff]
  %v40 = vld [vmem:[%s2 + $0x78] sm:$0xff]
  %v41 = vld [vmem:[%s2 + $0x80] sm:$0xff]
  %v42 = vld [vmem:[%s2 + $0x88] sm:$0xff]
  %v43 = vld [vmem:[%s2 + $0x90] sm:$0x33]
  %v44 = vld [vmem:[%s2 + $0x98] sm:$0x33]
  %v65 = vunpack.c.l.b16 %v25
  %v66 = vunpack.c.h.b16 %v25
  %v67 = vunpack.c.l.b16 %v26
  %v68 = vunpack.c.h.b16 %v26
  %v69 = vunpack.c.l.b16 %v27
  %v70 = vunpack.c.h.b16 %v27
  %v71 = vunpack.c.l.b16 %v28
  %v72 = vunpack.c.h.b16 %v28
  %v73 = vunpack.c.l.b16 %v29
  %v74 = vunpack.c.h.b16 %v29
  %v75 = vunpack.c.l.b16 %v30
  %v76 = vunpack.c.h.b16 %v30
  %v77 = vunpack.c.l.b16 %v31
  %v78 = vunpack.c.h.b16 %v31
  %v79 = vunpack.c.l.b16 %v32
  %v80 = vunpack.c.h.b16 %v32
  %v81 = vunpack.c.l.b16 %v33
  %v82 = vunpack.c.h.b16 %v33
  %v83 = vunpack.c.l.b16 %v34
  %v84 = vunpack.c.h.b16 %v34
  %v85 = vunpack.c.l.b16 %v35
  %v86 = vunpack.c.h.b16 %v35
  %v87 = vunpack.c.l.b16 %v36
  %v88 = vunpack.c.h.b16 %v36
  %v89 = vunpack.c.l.b16 %v37
  %v90 = vunpack.c.h.b16 %v37
  %v91 = vunpack.c.l.b16 %v38
  %v92 = vunpack.c.h.b16 %v38
  %v93 = vunpack.c.l.b16 %v39
  %v94 = vunpack.c.h.b16 %v39
  %v95 = vunpack.c.l.b16 %v40
  %v96 = vunpack.c.h.b16 %v40
  %v97 = vunpack.c.l.b16 %v41
  %v98 = vunpack.c.h.b16 %v41
  %v99 = vunpack.c.l.b16 %v42
  %v100 = vunpack.c.h.b16 %v42
  %v101 = vunpack.c.l.b16 %v43
  %v102 = vunpack.c.h.b16 %v43
  %v103 = vunpack.c.l.b16 %v44
  %v104 = vunpack.c.h.b16 %v44
  %v105 = vpack.c.b16 %v69, %v65
  %v106 = vpack.c.b16 %v70, %v66
  %v107 = vpack.c.b16 %v71, %v67
  %v108 = vpack.c.b16 %v72, %v68
  %v109 = vpack.c.b16 %v77, %v73
  %v110 = vpack.c.b16 %v78, %v74
  %v111 = vpack.c.b16 %v79, %v75
  %v112 = vpack.c.b16 %v80, %v76
  %v113 = vpack.c.b16 %v85, %v81
  %v114 = vpack.c.b16 %v86, %v82
  %v115 = vpack.c.b16 %v87, %v83
  %v116 = vpack.c.b16 %v88, %v84
  %v117 = vpack.c.b16 %v93, %v89
  %v118 = vpack.c.b16 %v94, %v90
  %v119 = vpack.c.b16 %v95, %v91
  %v120 = vpack.c.b16 %v96, %v92
  %v121 = vpack.c.b16 %v101, %v97
  %v122 = vpack.c.b16 %v102, %v98
  %v123 = vpack.c.b16 %v103, %v99
  %v124 = vpack.c.b16 %v104, %v100
  %vm141 = vcmask 613376
  %v143 = vsel %vm141, %v24, 0
  %vm145 = vcmask 1044480
  %vm146 = vcmask 1045504
  %v147 = vsel %vm145, 4294967295, 65535
  %v148 = vsel %vm146, %v147, 0
  %v150 = vand.u32 %v121, %v148
  %v153 = vand.u32 %v122, %v148
  %v156 = vand.u32 %v123, %v148
  %v159 = vand.u32 %v124, %v148
  %161 = vmatprep.subr.bf16.mxu0 0
  %162 = vmatpush1.bf16.msra.mxu0 0
  %163 = vmatprep.subr.bf16.mxu0 0
  %164 = vmatpush1.bf16.msra.mxu0 0
  %165 = vmatprep.subr.bf16.mxu0 0
  %166 = vmatpush1.bf16.msra.mxu0 0
  %167 = vmatprep.subr.bf16.mxu0 %v153
  %168 = vmatpush1.bf16.msra.mxu0 %v150
  %169 = vmatprep.subr.bf16.mxu0 %v118
  %170 = vmatpush1.bf16.msra.mxu0 %v117
  %171 = vmatprep.subr.bf16.mxu0 %v114
  %172 = vmatpush1.bf16.msra.mxu0 %v113
  %173 = vmatprep.subr.bf16.mxu0 %v110
  %174 = vmatpush1.bf16.msra.mxu0 %v109
  %175 = vmatprep.subr.bf16.mxu0 %v106
  %176 = vmatpush1.bf16.msra.mxu0 %v105
  %177 = vmatprep.subr.bf16.mxu0 0
  %178 = vmatpush2.bf16.msra.mxu0 0
  %179 = vmatprep.subr.bf16.mxu0 0
  %180 = vmatpush2.bf16.msra.mxu0 0
  %181 = vmatprep.subr.bf16.mxu0 0
  %182 = vmatpush2.bf16.msra.mxu0 0
  %183 = vmatprep.subr.bf16.mxu0 0
  %184 = vmatpush2.bf16.msra.mxu0 0
  %185 = vmatprep.subr.bf16.mxu0 0
  %186 = vmatpush2.bf16.msra.mxu0 0
  %187 = vmatprep.subr.bf16.mxu0 0
  %188 = vmatpush2.bf16.msra.mxu0 0
  %189 = vmatprep.subr.bf16.mxu0 0
  %190 = vmatpush2.bf16.msra.mxu0 0
  %191 = vmatprep.subr.bf16.mxu0 0
  %192 = vmatpush2.bf16.msra.mxu0 0
  %193 = vmatprep.mubr.bf16.mxu0 0
  %194 = vmatmul.mubr.bf16.gmra.mxu0 %v143
  %v195 = vpop.f32.mrf.mxu0
  %v196 = vadd.f32 0.0, %v195
  %v197 = vpop.f32.mrf.mxu0
  %v198 = vadd.f32 0.0, %v197
  %v199 = vpop.f32.mrf.mxu0
  %v200 = vpop.f32.mrf.mxu0
  %201 = vdwg.mxu0
  %202 = vmatprep.subr.bf16.mxu0 0
  %203 = vmatpush1.bf16.msra.mxu0 0
  %204 = vmatprep.subr.bf16.mxu0 0
  %205 = vmatpush1.bf16.msra.mxu0 0
  %206 = vmatprep.subr.bf16.mxu0 0
  %207 = vmatpush1.bf16.msra.mxu0 0
  %208 = vmatprep.subr.bf16.mxu0 %v159
  %209 = vmatpush1.bf16.msra.mxu0 %v156
  %210 = vmatprep.subr.bf16.mxu0 %v120
  %211 = vmatpush1.bf16.msra.mxu0 %v119
  %212 = vmatprep.subr.bf16.mxu0 %v116
  %213 = vmatpush1.bf16.msra.mxu0 %v115
  %214 = vmatprep.subr.bf16.mxu0 %v112
  %215 = vmatpush1.bf16.msra.mxu0 %v111
  %216 = vmatprep.subr.bf16.mxu0 %v108
  %217 = vmatpush1.bf16.msra.mxu0 %v107
  %218 = vmatprep.subr.bf16.mxu0 0
  %219 = vmatpush2.bf16.msra.mxu0 0
  %220 = vmatprep.subr.bf16.mxu0 0
  %221 = vmatpush2.bf16.msra.mxu0 0
  %222 = vmatprep.subr.bf16.mxu0 0
  %223 = vmatpush2.bf16.msra.mxu0 0
  %224 = vmatprep.subr.bf16.mxu0 0
  %225 = vmatpush2.bf16.msra.mxu0 0
  %226 = vmatprep.subr.bf16.mxu0 0
  %227 = vmatpush2.bf16.msra.mxu0 0
  %228 = vmatprep.subr.bf16.mxu0 0
  %229 = vmatpush2.bf16.msra.mxu0 0
  %230 = vmatprep.subr.bf16.mxu0 0
  %231 = vmatpush2.bf16.msra.mxu0 0
  %232 = vmatprep.subr.bf16.mxu0 0
  %233 = vmatpush2.bf16.msra.mxu0 0
  %234 = vmatprep.mubr.bf16.mxu0 0
  %235 = vmatmul.mubr.bf16.gmra.mxu0 %v143
  %v236 = vpop.f32.mrf.mxu0
  %v237 = vadd.f32 0.0, %v236
  %v238 = vpop.f32.mrf.mxu0
  %v239 = vadd.f32 0.0, %v238
  %v240 = vpop.f32.mrf.mxu0
  %v241 = vpop.f32.mrf.mxu0
  %242 = vdwg.mxu0
  %v243 = vld [vmem:[%s3] sm:$0xff]
  %v244 = vld [vmem:[%s3 + $0x8] sm:$0xff]
  %v245 = vld [vmem:[%s3 + $0x10] sm:$0xff]
  %v246 = vld [vmem:[%s3 + $0x18] sm:$0xff]
  %v247 = vld [vmem:[%s3 + $0x20] sm:$0xff]
  %v248 = vld [vmem:[%s3 + $0x28] sm:$0xff]
  %v249 = vld [vmem:[%s3 + $0x30] sm:$0xff]
  %v250 = vld [vmem:[%s3 + $0x38] sm:$0xff]
  %v251 = vld [vmem:[%s3 + $0x40] sm:$0xff]
  %v252 = vld [vmem:[%s3 + $0x48] sm:$0xff]
  %v253 = vld [vmem:[%s3 + $0x50] sm:$0xff]
  %v254 = vld [vmem:[%s3 + $0x58] sm:$0xff]
  %v255 = vld [vmem:[%s3 + $0x60] sm:$0xff]
  %v256 = vld [vmem:[%s3 + $0x68] sm:$0xff]
  %v257 = vld [vmem:[%s3 + $0x70] sm:$0xff]
  %v258 = vld [vmem:[%s3 + $0x78] sm:$0xff]
  %v259 = vld [vmem:[%s3 + $0x80] sm:$0xff]
  %v260 = vld [vmem:[%s3 + $0x88] sm:$0xff]
  %v261 = vld [vmem:[%s3 + $0x90] sm:$0x33]
  %v262 = vld [vmem:[%s3 + $0x98] sm:$0x33]
  %v283 = vunpack.c.l.b16 %v243
  %v284 = vunpack.c.h.b16 %v243
  %v285 = vunpack.c.l.b16 %v244
  %v286 = vunpack.c.h.b16 %v244
  %v287 = vunpack.c.l.b16 %v245
  %v288 = vunpack.c.h.b16 %v245
  %v289 = vunpack.c.l.b16 %v246
  %v290 = vunpack.c.h.b16 %v246
  %v291 = vunpack.c.l.b16 %v247
  %v292 = vunpack.c.h.b16 %v247
  %v293 = vunpack.c.l.b16 %v248
  %v294 = vunpack.c.h.b16 %v248
  %v295 = vunpack.c.l.b16 %v249
  %v296 = vunpack.c.h.b16 %v249
  %v297 = vunpack.c.l.b16 %v250
  %v298 = vunpack.c.h.b16 %v250
  %v299 = vunpack.c.l.b16 %v251
  %v300 = vunpack.c.h.b16 %v251
  %v301 = vunpack.c.l.b16 %v252
  %v302 = vunpack.c.h.b16 %v252
  %v303 = vunpack.c.l.b16 %v253
  %v304 = vunpack.c.h.b16 %v253
  %v305 = vunpack.c.l.b16 %v254
  %v306 = vunpack.c.h.b16 %v254
  %v307 = vunpack.c.l.b16 %v255
  %v308 = vunpack.c.h.b16 %v255
  %v309 = vunpack.c.l.b16 %v256
  %v310 = vunpack.c.h.b16 %v256
  %v311 = vunpack.c.l.b16 %v257
  %v312 = vunpack.c.h.b16 %v257
  %v313 = vunpack.c.l.b16 %v258
  %v314 = vunpack.c.h.b16 %v258
  %v315 = vunpack.c.l.b16 %v259
  %v316 = vunpack.c.h.b16 %v259
  %v317 = vunpack.c.l.b16 %v260
  %v318 = vunpack.c.h.b16 %v260
  %v319 = vunpack.c.l.b16 %v261
  %v320 = vunpack.c.h.b16 %v261
  %v321 = vunpack.c.l.b16 %v262
  %v322 = vunpack.c.h.b16 %v262
  %v323 = vpack.c.b16 %v287, %v283
  %v324 = vpack.c.b16 %v288, %v284
  %v325 = vpack.c.b16 %v289, %v285
  %v326 = vpack.c.b16 %v290, %v286
  %v327 = vpack.c.b16 %v295, %v291
  %v328 = vpack.c.b16 %v296, %v292
  %v329 = vpack.c.b16 %v297, %v293
  %v330 = vpack.c.b16 %v298, %v294
  %v331 = vpack.c.b16 %v303, %v299
  %v332 = vpack.c.b16 %v304, %v300
  %v333 = vpack.c.b16 %v305, %v301
  %v334 = vpack.c.b16 %v306, %v302
  %v335 = vpack.c.b16 %v311, %v307
  %v336 = vpack.c.b16 %v312, %v308
  %v337 = vpack.c.b16 %v313, %v309
  %v338 = vpack.c.b16 %v314, %v310
  %v339 = vpack.c.b16 %v319, %v315
  %v340 = vpack.c.b16 %v320, %v316
  %v341 = vpack.c.b16 %v321, %v317
  %v342 = vpack.c.b16 %v322, %v318
  %v360 = vand.u32 %v339, %v148
  %v363 = vand.u32 %v340, %v148
  %v366 = vand.u32 %v341, %v148
  %v369 = vand.u32 %v342, %v148
  %371 = vmatprep.subr.bf16.mxu0 0
  %372 = vmatpush1.bf16.msra.mxu0 0
  %373 = vmatprep.subr.bf16.mxu0 0
  %374 = vmatpush1.bf16.msra.mxu0 0
  %375 = vmatprep.subr.bf16.mxu0 0
  %376 = vmatpush1.bf16.msra.mxu0 0
  %377 = vmatprep.subr.bf16.mxu0 %v363
  %378 = vmatpush1.bf16.msra.mxu0 %v360
  %379 = vmatprep.subr.bf16.mxu0 %v336
  %380 = vmatpush1.bf16.msra.mxu0 %v335
  %381 = vmatprep.subr.bf16.mxu0 %v332
  %382 = vmatpush1.bf16.msra.mxu0 %v331
  %383 = vmatprep.subr.bf16.mxu0 %v328
  %384 = vmatpush1.bf16.msra.mxu0 %v327
  %385 = vmatprep.subr.bf16.mxu0 %v324
  %386 = vmatpush1.bf16.msra.mxu0 %v323
  %387 = vmatprep.subr.bf16.mxu0 0
  %388 = vmatpush2.bf16.msra.mxu0 0
  %389 = vmatprep.subr.bf16.mxu0 0
  %390 = vmatpush2.bf16.msra.mxu0 0
  %391 = vmatprep.subr.bf16.mxu0 0
  %392 = vmatpush2.bf16.msra.mxu0 0
  %393 = vmatprep.subr.bf16.mxu0 0
  %394 = vmatpush2.bf16.msra.mxu0 0
  %395 = vmatprep.subr.bf16.mxu0 0
  %396 = vmatpush2.bf16.msra.mxu0 0
  %397 = vmatprep.subr.bf16.mxu0 0
  %398 = vmatpush2.bf16.msra.mxu0 0
  %399 = vmatprep.subr.bf16.mxu0 0
  %400 = vmatpush2.bf16.msra.mxu0 0
  %401 = vmatprep.subr.bf16.mxu0 0
  %402 = vmatpush2.bf16.msra.mxu0 0
  %403 = vmatprep.mubr.bf16.mxu0 0
  %404 = vmatmul.mubr.bf16.gmra.mxu0 %v143
  %v405 = vpop.f32.mrf.mxu0
  %v406 = vadd.f32 0.0, %v405
  %v407 = vpop.f32.mrf.mxu0
  %v408 = vadd.f32 0.0, %v407
  %v409 = vpop.f32.mrf.mxu0
  %v410 = vpop.f32.mrf.mxu0
  %411 = vdwg.mxu0
  %412 = vmatprep.subr.bf16.mxu0 0
  %413 = vmatpush1.bf16.msra.mxu0 0
  %414 = vmatprep.subr.bf16.mxu0 0
  %415 = vmatpush1.bf16.msra.mxu0 0
  %416 = vmatprep.subr.bf16.mxu0 0
  %417 = vmatpush1.bf16.msra.mxu0 0
  %418 = vmatprep.subr.bf16.mxu0 %v369
  %419 = vmatpush1.bf16.msra.mxu0 %v366
  %420 = vmatprep.subr.bf16.mxu0 %v338
  %421 = vmatpush1.bf16.msra.mxu0 %v337
  %422 = vmatprep.subr.bf16.mxu0 %v334
  %423 = vmatpush1.bf16.msra.mxu0 %v333
  %424 = vmatprep.subr.bf16.mxu0 %v330
  %425 = vmatpush1.bf16.msra.mxu0 %v329
  %426 = vmatprep.subr.bf16.mxu0 %v326
  %427 = vmatpush1.bf16.msra.mxu0 %v325
  %428 = vmatprep.subr.bf16.mxu0 0
  %429 = vmatpush2.bf16.msra.mxu0 0
  %430 = vmatprep.subr.bf16.mxu0 0
  %431 = vmatpush2.bf16.msra.mxu0 0
  %432 = vmatprep.subr.bf16.mxu0 0
  %433 = vmatpush2.bf16.msra.mxu0 0
  %434 = vmatprep.subr.bf16.mxu0 0
  %435 = vmatpush2.bf16.msra.mxu0 0
  %436 = vmatprep.subr.bf16.mxu0 0
  %437 = vmatpush2.bf16.msra.mxu0 0
  %438 = vmatprep.subr.bf16.mxu0 0
  %439 = vmatpush2.bf16.msra.mxu0 0
  %440 = vmatprep.subr.bf16.mxu0 0
  %441 = vmatpush2.bf16.msra.mxu0 0
  %442 = vmatprep.subr.bf16.mxu0 0
  %443 = vmatpush2.bf16.msra.mxu0 0
  %444 = vmatprep.mubr.bf16.mxu0 0
  %445 = vmatmul.mubr.bf16.gmra.mxu0 %v143
  %v446 = vpop.f32.mrf.mxu0
  %v447 = vadd.f32 0.0, %v446
  %v448 = vpop.f32.mrf.mxu0
  %v449 = vadd.f32 0.0, %v448
  %v450 = vpop.f32.mrf.mxu0
  %v451 = vpop.f32.mrf.mxu0
  %452 = vdwg.mxu0
  %v453 = vmax.f32 %v196, %v406
  %v454 = vmax.f32 %v198, %v408
  %v455 = vmax.f32 %v237, %v447
  %v456 = vmax.f32 %v239, %v449
  %v457 = vld [vmem:[%s4] sm:$0xff]
  %v458 = vld [vmem:[%s4 + $0x8] sm:$0xff]
  %v459 = vld [vmem:[%s4 + $0x10] sm:$0xff]
  %v460 = vld [vmem:[%s4 + $0x18] sm:$0xff]
  %v461 = vld [vmem:[%s4 + $0x20] sm:$0xff]
  %v462 = vld [vmem:[%s4 + $0x28] sm:$0xff]
  %v463 = vld [vmem:[%s4 + $0x30] sm:$0xff]
  %v464 = vld [vmem:[%s4 + $0x38] sm:$0xff]
  %v465 = vld [vmem:[%s4 + $0x40] sm:$0xff]
  %v466 = vld [vmem:[%s4 + $0x48] sm:$0xff]
  %v467 = vld [vmem:[%s4 + $0x50] sm:$0xff]
  %v468 = vld [vmem:[%s4 + $0x58] sm:$0xff]
  %v469 = vld [vmem:[%s4 + $0x60] sm:$0xff]
  %v470 = vld [vmem:[%s4 + $0x68] sm:$0xff]
  %v471 = vld [vmem:[%s4 + $0x70] sm:$0xff]
  %v472 = vld [vmem:[%s4 + $0x78] sm:$0xff]
  %v473 = vld [vmem:[%s4 + $0x80] sm:$0xff]
  %v474 = vld [vmem:[%s4 + $0x88] sm:$0xff]
  %v475 = vld [vmem:[%s4 + $0x90] sm:$0x33]
  %v476 = vld [vmem:[%s4 + $0x98] sm:$0x33]
  %v497 = vunpack.c.l.b16 %v457
  %v498 = vunpack.c.h.b16 %v457
  %v499 = vunpack.c.l.b16 %v458
  %v500 = vunpack.c.h.b16 %v458
  %v501 = vunpack.c.l.b16 %v459
  %v502 = vunpack.c.h.b16 %v459
  %v503 = vunpack.c.l.b16 %v460
  %v504 = vunpack.c.h.b16 %v460
  %v505 = vunpack.c.l.b16 %v461
  %v506 = vunpack.c.h.b16 %v461
  %v507 = vunpack.c.l.b16 %v462
  %v508 = vunpack.c.h.b16 %v462
  %v509 = vunpack.c.l.b16 %v463
  %v510 = vunpack.c.h.b16 %v463
  %v511 = vunpack.c.l.b16 %v464
  %v512 = vunpack.c.h.b16 %v464
  %v513 = vunpack.c.l.b16 %v465
  %v514 = vunpack.c.h.b16 %v465
  %v515 = vunpack.c.l.b16 %v466
  %v516 = vunpack.c.h.b16 %v466
  %v517 = vunpack.c.l.b16 %v467
  %v518 = vunpack.c.h.b16 %v467
  %v519 = vunpack.c.l.b16 %v468
  %v520 = vunpack.c.h.b16 %v468
  %v521 = vunpack.c.l.b16 %v469
  %v522 = vunpack.c.h.b16 %v469
  %v523 = vunpack.c.l.b16 %v470
  %v524 = vunpack.c.h.b16 %v470
  %v525 = vunpack.c.l.b16 %v471
  %v526 = vunpack.c.h.b16 %v471
  %v527 = vunpack.c.l.b16 %v472
  %v528 = vunpack.c.h.b16 %v472
  %v529 = vunpack.c.l.b16 %v473
  %v530 = vunpack.c.h.b16 %v473
  %v531 = vunpack.c.l.b16 %v474
  %v532 = vunpack.c.h.b16 %v474
  %v533 = vunpack.c.l.b16 %v475
  %v534 = vunpack.c.h.b16 %v475
  %v535 = vunpack.c.l.b16 %v476
  %v536 = vunpack.c.h.b16 %v476
  %v537 = vpack.c.b16 %v501, %v497
  %v538 = vpack.c.b16 %v502, %v498
  %v539 = vpack.c.b16 %v503, %v499
  %v540 = vpack.c.b16 %v504, %v500
  %v541 = vpack.c.b16 %v509, %v505
  %v542 = vpack.c.b16 %v510, %v506
  %v543 = vpack.c.b16 %v511, %v507
  %v544 = vpack.c.b16 %v512, %v508
  %v545 = vpack.c.b16 %v517, %v513
  %v546 = vpack.c.b16 %v518, %v514
  %v547 = vpack.c.b16 %v519, %v515
  %v548 = vpack.c.b16 %v520, %v516
  %v549 = vpack.c.b16 %v525, %v521
  %v550 = vpack.c.b16 %v526, %v522
  %v551 = vpack.c.b16 %v527, %v523
  %v552 = vpack.c.b16 %v528, %v524
  %v553 = vpack.c.b16 %v533, %v529
  %v554 = vpack.c.b16 %v534, %v530
  %v555 = vpack.c.b16 %v535, %v531
  %v556 = vpack.c.b16 %v536, %v532
  %v574 = vand.u32 %v553, %v148
  %v577 = vand.u32 %v554, %v148
  %v580 = vand.u32 %v555, %v148
  %v583 = vand.u32 %v556, %v148
  %585 = vmatprep.subr.bf16.mxu0 0
  %586 = vmatpush1.bf16.msra.mxu0 0
  %587 = vmatprep.subr.bf16.mxu0 0
  %588 = vmatpush1.bf16.msra.mxu0 0
  %589 = vmatprep.subr.bf16.mxu0 0
  %590 = vmatpush1.bf16.msra.mxu0 0
  %591 = vmatprep.subr.bf16.mxu0 %v577
  %592 = vmatpush1.bf16.msra.mxu0 %v574
  %593 = vmatprep.subr.bf16.mxu0 %v550
  %594 = vmatpush1.bf16.msra.mxu0 %v549
  %595 = vmatprep.subr.bf16.mxu0 %v546
  %596 = vmatpush1.bf16.msra.mxu0 %v545
  %597 = vmatprep.subr.bf16.mxu0 %v542
  %598 = vmatpush1.bf16.msra.mxu0 %v541
  %599 = vmatprep.subr.bf16.mxu0 %v538
  %600 = vmatpush1.bf16.msra.mxu0 %v537
  %601 = vmatprep.subr.bf16.mxu0 0
  %602 = vmatpush2.bf16.msra.mxu0 0
  %603 = vmatprep.subr.bf16.mxu0 0
  %604 = vmatpush2.bf16.msra.mxu0 0
  %605 = vmatprep.subr.bf16.mxu0 0
  %606 = vmatpush2.bf16.msra.mxu0 0
  %607 = vmatprep.subr.bf16.mxu0 0
  %608 = vmatpush2.bf16.msra.mxu0 0
  %609 = vmatprep.subr.bf16.mxu0 0
  %610 = vmatpush2.bf16.msra.mxu0 0
  %611 = vmatprep.subr.bf16.mxu0 0
  %612 = vmatpush2.bf16.msra.mxu0 0
  %613 = vmatprep.subr.bf16.mxu0 0
  %614 = vmatpush2.bf16.msra.mxu0 0
  %615 = vmatprep.subr.bf16.mxu0 0
  %616 = vmatpush2.bf16.msra.mxu0 0
  %617 = vmatprep.mubr.bf16.mxu0 0
  %618 = vmatmul.mubr.bf16.gmra.mxu0 %v143
  %v619 = vpop.f32.mrf.mxu0
  %v620 = vadd.f32 0.0, %v619
  %v621 = vpop.f32.mrf.mxu0
  %v622 = vadd.f32 0.0, %v621
  %v623 = vpop.f32.mrf.mxu0
  %v624 = vpop.f32.mrf.mxu0
  %625 = vdwg.mxu0
  %626 = vmatprep.subr.bf16.mxu0 0
  %627 = vmatpush1.bf16.msra.mxu0 0
  %628 = vmatprep.subr.bf16.mxu0 0
  %629 = vmatpush1.bf16.msra.mxu0 0
  %630 = vmatprep.subr.bf16.mxu0 0
  %631 = vmatpush1.bf16.msra.mxu0 0
  %632 = vmatprep.subr.bf16.mxu0 %v583
  %633 = vmatpush1.bf16.msra.mxu0 %v580
  %634 = vmatprep.subr.bf16.mxu0 %v552
  %635 = vmatpush1.bf16.msra.mxu0 %v551
  %636 = vmatprep.subr.bf16.mxu0 %v548
  %637 = vmatpush1.bf16.msra.mxu0 %v547
  %638 = vmatprep.subr.bf16.mxu0 %v544
  %639 = vmatpush1.bf16.msra.mxu0 %v543
  %640 = vmatprep.subr.bf16.mxu0 %v540
  %641 = vmatpush1.bf16.msra.mxu0 %v539
  %642 = vmatprep.subr.bf16.mxu0 0
  %643 = vmatpush2.bf16.msra.mxu0 0
  %644 = vmatprep.subr.bf16.mxu0 0
  %645 = vmatpush2.bf16.msra.mxu0 0
  %646 = vmatprep.subr.bf16.mxu0 0
  %647 = vmatpush2.bf16.msra.mxu0 0
  %648 = vmatprep.subr.bf16.mxu0 0
  %649 = vmatpush2.bf16.msra.mxu0 0
  %650 = vmatprep.subr.bf16.mxu0 0
  %651 = vmatpush2.bf16.msra.mxu0 0
  %652 = vmatprep.subr.bf16.mxu0 0
  %653 = vmatpush2.bf16.msra.mxu0 0
  %654 = vmatprep.subr.bf16.mxu0 0
  %655 = vmatpush2.bf16.msra.mxu0 0
  %656 = vmatprep.subr.bf16.mxu0 0
  %657 = vmatpush2.bf16.msra.mxu0 0
  %658 = vmatprep.mubr.bf16.mxu0 0
  %659 = vmatmul.mubr.bf16.gmra.mxu0 %v143
  %v660 = vpop.f32.mrf.mxu0
  %v661 = vadd.f32 0.0, %v660
  %v662 = vpop.f32.mrf.mxu0
  %v663 = vadd.f32 0.0, %v662
  %v664 = vpop.f32.mrf.mxu0
  %v665 = vpop.f32.mrf.mxu0
  %666 = vdwg.mxu0
  %v667 = vmax.f32 %v453, %v620
  %v668 = vmax.f32 %v454, %v622
  %v669 = vmax.f32 %v455, %v661
  %v670 = vmax.f32 %v456, %v663
  %v671 = vld [vmem:[%s5] sm:$0xff]
  %v672 = vld [vmem:[%s5 + $0x8] sm:$0xff]
  %v673 = vld [vmem:[%s5 + $0x10] sm:$0xff]
  %v674 = vld [vmem:[%s5 + $0x18] sm:$0xff]
  %v675 = vld [vmem:[%s5 + $0x20] sm:$0xff]
  %v676 = vld [vmem:[%s5 + $0x28] sm:$0xff]
  %v677 = vld [vmem:[%s5 + $0x30] sm:$0xff]
  %v678 = vld [vmem:[%s5 + $0x38] sm:$0xff]
  %v679 = vld [vmem:[%s5 + $0x40] sm:$0xff]
  %v680 = vld [vmem:[%s5 + $0x48] sm:$0xff]
  %v681 = vld [vmem:[%s5 + $0x50] sm:$0xff]
  %v682 = vld [vmem:[%s5 + $0x58] sm:$0xff]
  %v683 = vld [vmem:[%s5 + $0x60] sm:$0xff]
  %v684 = vld [vmem:[%s5 + $0x68] sm:$0xff]
  %v685 = vld [vmem:[%s5 + $0x70] sm:$0xff]
  %v686 = vld [vmem:[%s5 + $0x78] sm:$0xff]
  %v687 = vld [vmem:[%s5 + $0x80] sm:$0xff]
  %v688 = vld [vmem:[%s5 + $0x88] sm:$0xff]
  %v689 = vld [vmem:[%s5 + $0x90] sm:$0x33]
  %v690 = vld [vmem:[%s5 + $0x98] sm:$0x33]
  %v711 = vunpack.c.l.b16 %v671
  %v712 = vunpack.c.h.b16 %v671
  %v713 = vunpack.c.l.b16 %v672
  %v714 = vunpack.c.h.b16 %v672
  %v715 = vunpack.c.l.b16 %v673
  %v716 = vunpack.c.h.b16 %v673
  %v717 = vunpack.c.l.b16 %v674
  %v718 = vunpack.c.h.b16 %v674
  %v719 = vunpack.c.l.b16 %v675
  %v720 = vunpack.c.h.b16 %v675
  %v721 = vunpack.c.l.b16 %v676
  %v722 = vunpack.c.h.b16 %v676
  %v723 = vunpack.c.l.b16 %v677
  %v724 = vunpack.c.h.b16 %v677
  %v725 = vunpack.c.l.b16 %v678
  %v726 = vunpack.c.h.b16 %v678
  %v727 = vunpack.c.l.b16 %v679
  %v728 = vunpack.c.h.b16 %v679
  %v729 = vunpack.c.l.b16 %v680
  %v730 = vunpack.c.h.b16 %v680
  %v731 = vunpack.c.l.b16 %v681
  %v732 = vunpack.c.h.b16 %v681
  %v733 = vunpack.c.l.b16 %v682
  %v734 = vunpack.c.h.b16 %v682
  %v735 = vunpack.c.l.b16 %v683
  %v736 = vunpack.c.h.b16 %v683
  %v737 = vunpack.c.l.b16 %v684
  %v738 = vunpack.c.h.b16 %v684
  %v739 = vunpack.c.l.b16 %v685
  %v740 = vunpack.c.h.b16 %v685
  %v741 = vunpack.c.l.b16 %v686
  %v742 = vunpack.c.h.b16 %v686
  %v743 = vunpack.c.l.b16 %v687
  %v744 = vunpack.c.h.b16 %v687
  %v745 = vunpack.c.l.b16 %v688
  %v746 = vunpack.c.h.b16 %v688
  %v747 = vunpack.c.l.b16 %v689
  %v748 = vunpack.c.h.b16 %v689
  %v749 = vunpack.c.l.b16 %v690
  %v750 = vunpack.c.h.b16 %v690
  %v751 = vpack.c.b16 %v715, %v711
  %v752 = vpack.c.b16 %v716, %v712
  %v753 = vpack.c.b16 %v717, %v713
  %v754 = vpack.c.b16 %v718, %v714
  %v755 = vpack.c.b16 %v723, %v719
  %v756 = vpack.c.b16 %v724, %v720
  %v757 = vpack.c.b16 %v725, %v721
  %v758 = vpack.c.b16 %v726, %v722
  %v759 = vpack.c.b16 %v731, %v727
  %v760 = vpack.c.b16 %v732, %v728
  %v761 = vpack.c.b16 %v733, %v729
  %v762 = vpack.c.b16 %v734, %v730
  %v763 = vpack.c.b16 %v739, %v735
  %v764 = vpack.c.b16 %v740, %v736
  %v765 = vpack.c.b16 %v741, %v737
  %v766 = vpack.c.b16 %v742, %v738
  %v767 = vpack.c.b16 %v747, %v743
  %v768 = vpack.c.b16 %v748, %v744
  %v769 = vpack.c.b16 %v749, %v745
  %v770 = vpack.c.b16 %v750, %v746
  %v788 = vand.u32 %v767, %v148
  %v791 = vand.u32 %v768, %v148
  %v794 = vand.u32 %v769, %v148
  %v797 = vand.u32 %v770, %v148
  %799 = vmatprep.subr.bf16.mxu0 0
  %800 = vmatpush1.bf16.msra.mxu0 0
  %801 = vmatprep.subr.bf16.mxu0 0
  %802 = vmatpush1.bf16.msra.mxu0 0
  %803 = vmatprep.subr.bf16.mxu0 0
  %804 = vmatpush1.bf16.msra.mxu0 0
  %805 = vmatprep.subr.bf16.mxu0 %v791
  %806 = vmatpush1.bf16.msra.mxu0 %v788
  %807 = vmatprep.subr.bf16.mxu0 %v764
  %808 = vmatpush1.bf16.msra.mxu0 %v763
  %809 = vmatprep.subr.bf16.mxu0 %v760
  %810 = vmatpush1.bf16.msra.mxu0 %v759
  %811 = vmatprep.subr.bf16.mxu0 %v756
  %812 = vmatpush1.bf16.msra.mxu0 %v755
  %813 = vmatprep.subr.bf16.mxu0 %v752
  %814 = vmatpush1.bf16.msra.mxu0 %v751
  %815 = vmatprep.subr.bf16.mxu0 0
  %816 = vmatpush2.bf16.msra.mxu0 0
  %817 = vmatprep.subr.bf16.mxu0 0
  %818 = vmatpush2.bf16.msra.mxu0 0
  %819 = vmatprep.subr.bf16.mxu0 0
  %820 = vmatpush2.bf16.msra.mxu0 0
  %821 = vmatprep.subr.bf16.mxu0 0
  %822 = vmatpush2.bf16.msra.mxu0 0
  %823 = vmatprep.subr.bf16.mxu0 0
  %824 = vmatpush2.bf16.msra.mxu0 0
  %825 = vmatprep.subr.bf16.mxu0 0
  %826 = vmatpush2.bf16.msra.mxu0 0
  %827 = vmatprep.subr.bf16.mxu0 0
  %828 = vmatpush2.bf16.msra.mxu0 0
  %829 = vmatprep.subr.bf16.mxu0 0
  %830 = vmatpush2.bf16.msra.mxu0 0
  %831 = vmatprep.mubr.bf16.mxu0 0
  %832 = vmatmul.mubr.bf16.gmra.mxu0 %v143
  %v833 = vpop.f32.mrf.mxu0
  %v834 = vadd.f32 0.0, %v833
  %v835 = vpop.f32.mrf.mxu0
  %v836 = vadd.f32 0.0, %v835
  %v837 = vpop.f32.mrf.mxu0
  %v838 = vpop.f32.mrf.mxu0
  %839 = vdwg.mxu0
  %840 = vmatprep.subr.bf16.mxu0 0
  %841 = vmatpush1.bf16.msra.mxu0 0
  %842 = vmatprep.subr.bf16.mxu0 0
  %843 = vmatpush1.bf16.msra.mxu0 0
  %844 = vmatprep.subr.bf16.mxu0 0
  %845 = vmatpush1.bf16.msra.mxu0 0
  %846 = vmatprep.subr.bf16.mxu0 %v797
  %847 = vmatpush1.bf16.msra.mxu0 %v794
  %848 = vmatprep.subr.bf16.mxu0 %v766
  %849 = vmatpush1.bf16.msra.mxu0 %v765
  %850 = vmatprep.subr.bf16.mxu0 %v762
  %851 = vmatpush1.bf16.msra.mxu0 %v761
  %852 = vmatprep.subr.bf16.mxu0 %v758
  %853 = vmatpush1.bf16.msra.mxu0 %v757
  %854 = vmatprep.subr.bf16.mxu0 %v754
  %855 = vmatpush1.bf16.msra.mxu0 %v753
  %856 = vmatprep.subr.bf16.mxu0 0
  %857 = vmatpush2.bf16.msra.mxu0 0
  %858 = vmatprep.subr.bf16.mxu0 0
  %859 = vmatpush2.bf16.msra.mxu0 0
  %860 = vmatprep.subr.bf16.mxu0 0
  %861 = vmatpush2.bf16.msra.mxu0 0
  %862 = vmatprep.subr.bf16.mxu0 0
  %863 = vmatpush2.bf16.msra.mxu0 0
  %864 = vmatprep.subr.bf16.mxu0 0
  %865 = vmatpush2.bf16.msra.mxu0 0
  %866 = vmatprep.subr.bf16.mxu0 0
  %867 = vmatpush2.bf16.msra.mxu0 0
  %868 = vmatprep.subr.bf16.mxu0 0
  %869 = vmatpush2.bf16.msra.mxu0 0
  %870 = vmatprep.subr.bf16.mxu0 0
  %871 = vmatpush2.bf16.msra.mxu0 0
  %872 = vmatprep.mubr.bf16.mxu0 0
  %873 = vmatmul.mubr.bf16.gmra.mxu0 %v143
  %v874 = vpop.f32.mrf.mxu0
  %v875 = vadd.f32 0.0, %v874
  %v876 = vpop.f32.mrf.mxu0
  %v877 = vadd.f32 0.0, %v876
  %v878 = vpop.f32.mrf.mxu0
  %v879 = vpop.f32.mrf.mxu0
  %880 = vdwg.mxu0
  %v881 = vmax.f32 %v667, %v834
  %v882 = vmax.f32 %v668, %v836
  %v883 = vmax.f32 %v669, %v875
  %v884 = vmax.f32 %v670, %v877
  %v885 = vld [vmem:[%s1] sm:$0x3f]
  %887 = vset.pattern.permute.xlu0 0
  %888 = vperm.xlu0 %887, %v885
  %v889 = vpop.permute.xlu0 %888
  %v891 = vadd.f32 %v881, %v889
  %v892 = vadd.f32 %v882, %v889
  %v893 = vadd.f32 %v883, %v889
  %v894 = vadd.f32 %v884, %v889
  %v895 = vmax.f32 %v891, 0.0
  %v896 = vmax.f32 %v892, 0.0
  %v897 = vmax.f32 %v893, 0.0
  %v898 = vmax.f32 %v894, 0.0
  %v899 = vpack.c.bf16 %v895, %v895
  %v900 = vpack.c.bf16 %v896, %v896
  %v901 = vpack.c.bf16 %v897, %v897
  %v902 = vpack.c.bf16 %v898, %v898
  %v907 = vunpack.c.l.b16 %v899
  %v908 = vunpack.c.l.b16 %v900
  %v909 = vunpack.c.l.b16 %v901
  %v910 = vunpack.c.l.b16 %v902
  %v911 = vpack.c.b16 %v908, %v907
  %v912 = vpack.c.b16 %v910, %v909
  %915 = vst [vmem:[%s6] sm:$0x77] %v911
  %vm916 = vcmask 1042432
  %vm917 = vcmask 63492
  %vm918 = vmor %vm917, %vm916
  %919 = vst.msk [vmem:[%s6 + $0x8] sm:$0x77] %vm918, %v912
  // Predicated region
  $region26: #{cnn_forward.2} parent=0 // pred_check
    _
  $region27: #{cnn_forward.2} parent=0 // pred_check_branch
    %921 = sbr.rel (0) target = $region29
  $region28: #{cnn_forward.2} parent=0 // pred_region
    _
  $region29: #{cnn_forward.2} parent=0 // pred_fallthru
    _
  // Predicated region
  $region30: #{cnn_forward.2} parent=0 // pred_check
    _
  $region31: #{cnn_forward.2} parent=0 // pred_check_branch
    %923 = sbr.rel (0) target = $region33
  $region32: #{cnn_forward.2} parent=0 // pred_region
    _
  $region33: #{cnn_forward.2} parent=0 // pred_fallthru
    _

// kernel: cnn_forward.3
$region0: #{cnn_forward.3}
  #allocation0 [shape = 'u32[]', space=smem, size = 0x4, offset = 0x4, fixed_abs, tag = 'smem constant byte address 0x4 - core index']
  #allocation1 [shape = 'u32[144,128]{1,0:T(1,128)}', space=vmem, size = 0x12000, scoped, tag = 'internal scratch']
  %s0 = inlined_call_operand.vmem [shape: bf16[16,150], index: 0, kind: input, shape index: {}]
  %s1 = inlined_call_operand.vmem [shape: f32[16,1], index: 1, kind: input, shape index: {}]
  %s2 = inlined_call_operand.vmem [shape: bf16[150,50], index: 2, kind: input, shape index: {}]
  %s3 = inlined_call_operand.vmem [shape: bf16[150,50], index: 3, kind: input, shape index: {}]
  %s4 = inlined_call_operand.vmem [shape: bf16[150,50], index: 4, kind: input, shape index: {}]
  %s5 = inlined_call_operand.vmem [shape: bf16[150,50], index: 5, kind: input, shape index: {}]
  %s6 = inlined_call_operand.vmem [shape: bf16[128,400], index: 6, kind: input, shape index: {}]
  %s7 = inlined_call_operand.vmem [shape: f32[128,1], index: 7, kind: input, shape index: {}]
  %s8 = inlined_call_operand.vmem [shape: bf16[128,128], index: 8, kind: input, shape index: {}]
  %s9 = inlined_call_operand.vmem [shape: f32[128,1], index: 9, kind: input, shape index: {}]
  %s10 = inlined_call_operand.vmem [shape: bf16[10,128], index: 10, kind: input, shape index: {}]
  %s11 = inlined_call_operand.vmem [shape: f32[10,1], index: 11, kind: input, shape index: {}]
  %s12 = inlined_call_operand.vmem [shape: f32[10,2], index: 12, kind: output, shape index: {}]
  %s13 = sld [smem:[#allocation0]]
  $region58: #{cnn_forward.3} parent=0
    _
  %s15 = ssub.s32 1, %s13
  %s16 = scalar_select 0, %s15, %s13
  // Predicated region
  $region2: #{cnn_forward.3} parent=0 // pred_check
    _
  $region3: #{cnn_forward.3} parent=0 // pred_check_branch
    %18 = sbr.rel (0) target = $region5
  $region4: #{cnn_forward.3} parent=0 // pred_region
    _
  $region5: #{cnn_forward.3} parent=0 // pred_fallthru
    _
  // Predicated region
  $region6: #{cnn_forward.3} parent=0 // pred_check
    _
  $region7: #{cnn_forward.3} parent=0 // pred_check_branch
    %20 = sbr.rel (0) target = $region9
  $region8: #{cnn_forward.3} parent=0 // pred_region
    _
  $region9: #{cnn_forward.3} parent=0 // pred_fallthru
    _
  // Predicated region
  $region10: #{cnn_forward.3} parent=0 // pred_check
    _
  $region11: #{cnn_forward.3} parent=0 // pred_check_branch
    %22 = sbr.rel (0) target = $region13
  $region12: #{cnn_forward.3} parent=0 // pred_region
    _
  $region13: #{cnn_forward.3} parent=0 // pred_fallthru
    _
  // Predicated region
  $region14: #{cnn_forward.3} parent=0 // pred_check
    _
  $region15: #{cnn_forward.3} parent=0 // pred_check_branch
    %24 = sbr.rel (0) target = $region17
  $region16: #{cnn_forward.3} parent=0 // pred_region
    _
  $region17: #{cnn_forward.3} parent=0 // pred_fallthru
    _
  // Predicated region
  $region18: #{cnn_forward.3} parent=0 // pred_check
    _
  $region19: #{cnn_forward.3} parent=0 // pred_check_branch
    %26 = sbr.rel (0) target = $region21
  $region20: #{cnn_forward.3} parent=0 // pred_region
    _
  $region21: #{cnn_forward.3} parent=0 // pred_fallthru
    _
  // Predicated region
  $region22: #{cnn_forward.3} parent=0 // pred_check
    _
  $region23: #{cnn_forward.3} parent=0 // pred_check_branch
    %28 = sbr.rel (0) target = $region25
  $region24: #{cnn_forward.3} parent=0 // pred_region
    _
  $region25: #{cnn_forward.3} parent=0 // pred_fallthru
    _
  // Predicated region
  $region26: #{cnn_forward.3} parent=0 // pred_check
    _
  $region27: #{cnn_forward.3} parent=0 // pred_check_branch
    %30 = sbr.rel (0) target = $region29
  $region28: #{cnn_forward.3} parent=0 // pred_region
    _
  $region29: #{cnn_forward.3} parent=0 // pred_fallthru
    _
  // Predicated region
  $region30: #{cnn_forward.3} parent=0 // pred_check
    _
  $region31: #{cnn_forward.3} parent=0 // pred_check_branch
    %32 = sbr.rel (0) target = $region33
  $region32: #{cnn_forward.3} parent=0 // pred_region
    _
  $region33: #{cnn_forward.3} parent=0 // pred_fallthru
    _
  // Predicated region
  $region34: #{cnn_forward.3} parent=0 // pred_check
    _
  $region35: #{cnn_forward.3} parent=0 // pred_check_branch
    %34 = sbr.rel (0) target = $region37
  $region36: #{cnn_forward.3} parent=0 // pred_region
    _
  $region37: #{cnn_forward.3} parent=0 // pred_fallthru
    _
  // Predicated region
  $region38: #{cnn_forward.3} parent=0 // pred_check
    _
  $region39: #{cnn_forward.3} parent=0 // pred_check_branch
    %36 = sbr.rel (0) target = $region41
  $region40: #{cnn_forward.3} parent=0 // pred_region
    _
  $region41: #{cnn_forward.3} parent=0 // pred_fallthru
    _
  // Predicated region
  $region42: #{cnn_forward.3} parent=0 // pred_check
    _
  $region43: #{cnn_forward.3} parent=0 // pred_check_branch
    %38 = sbr.rel (0) target = $region45
  $region44: #{cnn_forward.3} parent=0 // pred_region
    _
  $region45: #{cnn_forward.3} parent=0 // pred_fallthru
    _
  // Predicated region
  $region46: #{cnn_forward.3} parent=0 // pred_check
    _
  $region47: #{cnn_forward.3} parent=0 // pred_check_branch
    %40 = sbr.rel (0) target = $region49
  $region48: #{cnn_forward.3} parent=0 // pred_region
    _
  $region49: #{cnn_forward.3} parent=0 // pred_fallthru
    _
  %v42 = vld [vmem:[%s0] sm:$0xff]
  %v43 = vld [vmem:[%s0 + $0x8] sm:$0xff]
  %v44 = vld [vmem:[%s2] sm:$0xf]
  %v45 = vld [vmem:[%s2 + $0x4] sm:$0xf]
  %v46 = vld [vmem:[%s2 + $0x8] sm:$0xf]
  %v47 = vld [vmem:[%s2 + $0xc] sm:$0xf]
  %v48 = vld [vmem:[%s2 + $0x10] sm:$0xf]
  %v49 = vld [vmem:[%s2 + $0x14] sm:$0xf]
  %v50 = vld [vmem:[%s2 + $0x18] sm:$0xf]
  %v51 = vld [vmem:[%s2 + $0x1c] sm:$0xf]
  %v52 = vld [vmem:[%s2 + $0x20] sm:$0xf]
  %v53 = vld [vmem:[%s2 + $0x24] sm:$0xf]
  %v54 = vld [vmem:[%s2 + $0x28] sm:$0xf]
  %v55 = vld [vmem:[%s2 + $0x2c] sm:$0xf]
  %v56 = vld [vmem:[%s2 + $0x30] sm:$0xf]
  %v57 = vld [vmem:[%s2 + $0x34] sm:$0xf]
  %v58 = vld [vmem:[%s2 + $0x38] sm:$0xf]
  %v59 = vld [vmem:[%s2 + $0x3c] sm:$0xf]
  %v60 = vld [vmem:[%s2 + $0x40] sm:$0xf]
  %v61 = vld [vmem:[%s2 + $0x44] sm:$0xf]
  %v62 = vld [vmem:[%s2 + $0x48] sm:$0x7]
  %v65 = vunpack.c.l.b16 %v42
  %v66 = vunpack.c.h.b16 %v42
  %v67 = vunpack.c.l.b16 %v43
  %v68 = vunpack.c.h.b16 %v43
  %v69 = vpack.c.b16 %v67, %v65
  %v70 = vpack.c.b16 %v68, %v66
  %v91 = vunpack.c.l.b16 %v44
  %v92 = vunpack.c.l.b16 %v45
  %v93 = vunpack.c.l.b16 %v46
  %v94 = vunpack.c.l.b16 %v47
  %v95 = vunpack.c.l.b16 %v48
  %v96 = vunpack.c.l.b16 %v49
  %v97 = vunpack.c.l.b16 %v50
  %v98 = vunpack.c.l.b16 %v51
  %v99 = vunpack.c.l.b16 %v52
  %v100 = vunpack.c.l.b16 %v53
  %v101 = vunpack.c.l.b16 %v54
  %v102 = vunpack.c.l.b16 %v55
  %v103 = vunpack.c.l.b16 %v56
  %v104 = vunpack.c.l.b16 %v57
  %v105 = vunpack.c.l.b16 %v58
  %v106 = vunpack.c.l.b16 %v59
  %v107 = vunpack.c.l.b16 %v60
  %v108 = vunpack.c.l.b16 %v61
  %v109 = vunpack.c.l.b16 %v62
  %v110 = vpack.c.b16 %v92, %v91
  %v111 = vpack.c.b16 %v94, %v93
  %v112 = vpack.c.b16 %v96, %v95
  %v113 = vpack.c.b16 %v98, %v97
  %v114 = vpack.c.b16 %v100, %v99
  %v115 = vpack.c.b16 %v102, %v101
  %v116 = vpack.c.b16 %v104, %v103
  %v117 = vpack.c.b16 %v106, %v105
  %v118 = vpack.c.b16 %v108, %v107
  %v119 = vpack.c.b16 %v109, %v109
  %vm129 = vcmask 179200
  %v131 = vsel %vm129, %v70, 0
  %vm133 = vcmask 1042432
  %v135 = vsel %vm133, %v119, 0
  %137 = vmatprep.subr.bf16.mxu0 0
  %138 = vmatpush1.bf16.msra.mxu0 %v117
  %139 = vmatprep.subr.bf16.mxu0 0
  %140 = vmatpush1.bf16.msra.mxu0 %v116
  %141 = vmatprep.subr.bf16.mxu0 0
  %142 = vmatpush1.bf16.msra.mxu0 %v115
  %143 = vmatprep.subr.bf16.mxu0 0
  %144 = vmatpush1.bf16.msra.mxu0 %v114
  %145 = vmatprep.subr.bf16.mxu0 0
  %146 = vmatpush1.bf16.msra.mxu0 %v113
  %147 = vmatprep.subr.bf16.mxu0 0
  %148 = vmatpush1.bf16.msra.mxu0 %v112
  %149 = vmatprep.subr.bf16.mxu0 0
  %150 = vmatpush1.bf16.msra.mxu0 %v111
  %151 = vmatprep.subr.bf16.mxu0 0
  %152 = vmatpush1.bf16.msra.mxu0 %v110
  %153 = vmatprep.subr.bf16.mxu0 0
  %154 = vmatpush2.bf16.msra.mxu0 0
  %155 = vmatprep.subr.bf16.mxu0 0
  %156 = vmatpush2.bf16.msra.mxu0 0
  %157 = vmatprep.subr.bf16.mxu0 0
  %158 = vmatpush2.bf16.msra.mxu0 0
  %159 = vmatprep.subr.bf16.mxu0 0
  %160 = vmatpush2.bf16.msra.mxu0 0
  %161 = vmatprep.subr.bf16.mxu0 0
  %162 = vmatpush2.bf16.msra.mxu0 0
  %163 = vmatprep.subr.bf16.mxu0 0
  %164 = vmatpush2.bf16.msra.mxu0 0
  %165 = vmatprep.subr.bf16.mxu0 0
  %166 = vmatpush2.bf16.msra.mxu0 %v135
  %167 = vmatprep.subr.bf16.mxu0 0
  %168 = vmatpush2.bf16.msra.mxu0 %v118
  %169 = vmatprep.mubr.bf16.mxu0 %v131
  %170 = vmatmul.mubr.bf16.gmra.mxu0 %v69
  %v171 = vpop.f32.mrf.mxu0
  %v172 = vadd.f32 0.0, %v171
  %v173 = vpop.f32.mrf.mxu0
  %v174 = vpop.f32.mrf.mxu0
  %v175 = vadd.f32 0.0, %v174
  %v176 = vpop.f32.mrf.mxu0
  %177 = vdwg.mxu0
  %v178 = vld [vmem:[%s3] sm:$0xf]
  %v179 = vld [vmem:[%s3 + $0x4] sm:$0xf]
  %v180 = vld [vmem:[%s3 + $0x8] sm:$0xf]
  %v181 = vld [vmem:[%s3 + $0xc] sm:$0xf]
  %v182 = vld [vmem:[%s3 + $0x10] sm:$0xf]
  %v183 = vld [vmem:[%s3 + $0x14] sm:$0xf]
  %v184 = vld [vmem:[%s3 + $0x18] sm:$0xf]
  %v185 = vld [vmem:[%s3 + $0x1c] sm:$0xf]
  %v186 = vld [vmem:[%s3 + $0x20] sm:$0xf]
  %v187 = vld [vmem:[%s3 + $0x24] sm:$0xf]
  %v188 = vld [vmem:[%s3 + $0x28] sm:$0xf]
  %v189 = vld [vmem:[%s3 + $0x2c] sm:$0xf]
  %v190 = vld [vmem:[%s3 + $0x30] sm:$0xf]
  %v191 = vld [vmem:[%s3 + $0x34] sm:$0xf]
  %v192 = vld [vmem:[%s3 + $0x38] sm:$0xf]
  %v193 = vld [vmem:[%s3 + $0x3c] sm:$0xf]
  %v194 = vld [vmem:[%s3 + $0x40] sm:$0xf]
  %v195 = vld [vmem:[%s3 + $0x44] sm:$0xf]
  %v196 = vld [vmem:[%s3 + $0x48] sm:$0x7]
  %v216 = vunpack.c.l.b16 %v178
  %v217 = vunpack.c.l.b16 %v179
  %v218 = vunpack.c.l.b16 %v180
  %v219 = vunpack.c.l.b16 %v181
  %v220 = vunpack.c.l.b16 %v182
  %v221 = vunpack.c.l.b16 %v183
  %v222 = vunpack.c.l.b16 %v184
  %v223 = vunpack.c.l.b16 %v185
  %v224 = vunpack.c.l.b16 %v186
  %v225 = vunpack.c.l.b16 %v187
  %v226 = vunpack.c.l.b16 %v188
  %v227 = vunpack.c.l.b16 %v189
  %v228 = vunpack.c.l.b16 %v190
  %v229 = vunpack.c.l.b16 %v191
  %v230 = vunpack.c.l.b16 %v192
  %v231 = vunpack.c.l.b16 %v193
  %v232 = vunpack.c.l.b16 %v194
  %v233 = vunpack.c.l.b16 %v195
  %v234 = vunpack.c.l.b16 %v196
  %v235 = vpack.c.b16 %v217, %v216
  %v236 = vpack.c.b16 %v219, %v218
  %v237 = vpack.c.b16 %v221, %v220
  %v238 = vpack.c.b16 %v223, %v222
  %v239 = vpack.c.b16 %v225, %v224
  %v240 = vpack.c.b16 %v227, %v226
  %v241 = vpack.c.b16 %v229, %v228
  %v242 = vpack.c.b16 %v231, %v230
  %v243 = vpack.c.b16 %v233, %v232
  %v244 = vpack.c.b16 %v234, %v234
  %v255 = vsel %vm133, %v244, 0
  %257 = vmatprep.subr.bf16.mxu0 0
  %258 = vmatpush1.bf16.msra.mxu0 %v242
  %259 = vmatprep.subr.bf16.mxu0 0
  %260 = vmatpush1.bf16.msra.mxu0 %v241
  %261 = vmatprep.subr.bf16.mxu0 0
  %262 = vmatpush1.bf16.msra.mxu0 %v240
  %263 = vmatprep.subr.bf16.mxu0 0
  %264 = vmatpush1.bf16.msra.mxu0 %v239
  %265 = vmatprep.subr.bf16.mxu0 0
  %266 = vmatpush1.bf16.msra.mxu0 %v238
  %267 = vmatprep.subr.bf16.mxu0 0
  %268 = vmatpush1.bf16.msra.mxu0 %v237
  %269 = vmatprep.subr.bf16.mxu0 0
  %270 = vmatpush1.bf16.msra.mxu0 %v236
  %271 = vmatprep.subr.bf16.mxu0 0
  %272 = vmatpush1.bf16.msra.mxu0 %v235
  %273 = vmatprep.subr.bf16.mxu0 0
  %274 = vmatpush2.bf16.msra.mxu0 0
  %275 = vmatprep.subr.bf16.mxu0 0
  %276 = vmatpush2.bf16.msra.mxu0 0
  %277 = vmatprep.subr.bf16.mxu0 0
  %278 = vmatpush2.bf16.msra.mxu0 0
  %279 = vmatprep.subr.bf16.mxu0 0
  %280 = vmatpush2.bf16.msra.mxu0 0
  %281 = vmatprep.subr.bf16.mxu0 0
  %282 = vmatpush2.bf16.msra.mxu0 0
  %283 = vmatprep.subr.bf16.mxu0 0
  %284 = vmatpush2.bf16.msra.mxu0 0
  %285 = vmatprep.subr.bf16.mxu0 0
  %286 = vmatpush2.bf16.msra.mxu0 %v255
  %287 = vmatprep.subr.bf16.mxu0 0
  %288 = vmatpush2.bf16.msra.mxu0 %v243
  %289 = vmatprep.mubr.bf16.mxu0 %v131
  %290 = vmatmul.mubr.bf16.gmra.mxu0 %v69
  %v291 = vpop.f32.mrf.mxu0
  %v292 = vadd.f32 0.0, %v291
  %v293 = vpop.f32.mrf.mxu0
  %v294 = vpop.f32.mrf.mxu0
  %v295 = vadd.f32 0.0, %v294
  %v296 = vpop.f32.mrf.mxu0
  %297 = vdwg.mxu0
  %v298 = vmax.f32 %v172, %v292
  %v299 = vmax.f32 %v175, %v295
  %v300 = vld [vmem:[%s4] sm:$0xf]
  %v301 = vld [vmem:[%s4 + $0x4] sm:$0xf]
  %v302 = vld [vmem:[%s4 + $0x8] sm:$0xf]
  %v303 = vld [vmem:[%s4 + $0xc] sm:$0xf]
  %v304 = vld [vmem:[%s4 + $0x10] sm:$0xf]
  %v305 = vld [vmem:[%s4 + $0x14] sm:$0xf]
  %v306 = vld [vmem:[%s4 + $0x18] sm:$0xf]
  %v307 = vld [vmem:[%s4 + $0x1c] sm:$0xf]
  %v308 = vld [vmem:[%s4 + $0x20] sm:$0xf]
  %v309 = vld [vmem:[%s4 + $0x24] sm:$0xf]
  %v310 = vld [vmem:[%s4 + $0x28] sm:$0xf]
  %v311 = vld [vmem:[%s4 + $0x2c] sm:$0xf]
  %v312 = vld [vmem:[%s4 + $0x30] sm:$0xf]
  %v313 = vld [vmem:[%s4 + $0x34] sm:$0xf]
  %v314 = vld [vmem:[%s4 + $0x38] sm:$0xf]
  %v315 = vld [vmem:[%s4 + $0x3c] sm:$0xf]
  %v316 = vld [vmem:[%s4 + $0x40] sm:$0xf]
  %v317 = vld [vmem:[%s4 + $0x44] sm:$0xf]
  %v318 = vld [vmem:[%s4 + $0x48] sm:$0x7]
  %v338 = vunpack.c.l.b16 %v300
  %v339 = vunpack.c.l.b16 %v301
  %v340 = vunpack.c.l.b16 %v302
  %v341 = vunpack.c.l.b16 %v303
  %v342 = vunpack.c.l.b16 %v304
  %v343 = vunpack.c.l.b16 %v305
  %v344 = vunpack.c.l.b16 %v306
  %v345 = vunpack.c.l.b16 %v307
  %v346 = vunpack.c.l.b16 %v308
  %v347 = vunpack.c.l.b16 %v309
  %v348 = vunpack.c.l.b16 %v310
  %v349 = vunpack.c.l.b16 %v311
  %v350 = vunpack.c.l.b16 %v312
  %v351 = vunpack.c.l.b16 %v313
  %v352 = vunpack.c.l.b16 %v314
  %v353 = vunpack.c.l.b16 %v315
  %v354 = vunpack.c.l.b16 %v316
  %v355 = vunpack.c.l.b16 %v317
  %v356 = vunpack.c.l.b16 %v318
  %v357 = vpack.c.b16 %v339, %v338
  %v358 = vpack.c.b16 %v341, %v340
  %v359 = vpack.c.b16 %v343, %v342
  %v360 = vpack.c.b16 %v345, %v344
  %v361 = vpack.c.b16 %v347, %v346
  %v362 = vpack.c.b16 %v349, %v348
  %v363 = vpack.c.b16 %v351, %v350
  %v364 = vpack.c.b16 %v353, %v352
  %v365 = vpack.c.b16 %v355, %v354
  %v366 = vpack.c.b16 %v356, %v356
  %v377 = vsel %vm133, %v366, 0
  %379 = vmatprep.subr.bf16.mxu0 0
  %380 = vmatpush1.bf16.msra.mxu0 %v364
  %381 = vmatprep.subr.bf16.mxu0 0
  %382 = vmatpush1.bf16.msra.mxu0 %v363
  %383 = vmatprep.subr.bf16.mxu0 0
  %384 = vmatpush1.bf16.msra.mxu0 %v362
  %385 = vmatprep.subr.bf16.mxu0 0
  %386 = vmatpush1.bf16.msra.mxu0 %v361
  %387 = vmatprep.subr.bf16.mxu0 0
  %388 = vmatpush1.bf16.msra.mxu0 %v360
  %389 = vmatprep.subr.bf16.mxu0 0
  %390 = vmatpush1.bf16.msra.mxu0 %v359
  %391 = vmatprep.subr.bf16.mxu0 0
  %392 = vmatpush1.bf16.msra.mxu0 %v358
  %393 = vmatprep.subr.bf16.mxu0 0
  %394 = vmatpush1.bf16.msra.mxu0 %v357
  %395 = vmatprep.subr.bf16.mxu0 0
  %396 = vmatpush2.bf16.msra.mxu0 0
  %397 = vmatprep.subr.bf16.mxu0 0
  %398 = vmatpush2.bf16.msra.mxu0 0
  %399 = vmatprep.subr.bf16.mxu0 0
  %400 = vmatpush2.bf16.msra.mxu0 0
  %401 = vmatprep.subr.bf16.mxu0 0
  %402 = vmatpush2.bf16.msra.mxu0 0
  %403 = vmatprep.subr.bf16.mxu0 0
  %404 = vmatpush2.bf16.msra.mxu0 0
  %405 = vmatprep.subr.bf16.mxu0 0
  %406 = vmatpush2.bf16.msra.mxu0 0
  %407 = vmatprep.subr.bf16.mxu0 0
  %408 = vmatpush2.bf16.msra.mxu0 %v377
  %409 = vmatprep.subr.bf16.mxu0 0
  %410 = vmatpush2.bf16.msra.mxu0 %v365
  %411 = vmatprep.mubr.bf16.mxu0 %v131
  %412 = vmatmul.mubr.bf16.gmra.mxu0 %v69
  %v413 = vpop.f32.mrf.mxu0
  %v414 = vadd.f32 0.0, %v413
  %v415 = vpop.f32.mrf.mxu0
  %v416 = vpop.f32.mrf.mxu0
  %v417 = vadd.f32 0.0, %v416
  %v418 = vpop.f32.mrf.mxu0
  %419 = vdwg.mxu0
  %v420 = vmax.f32 %v298, %v414
  %v421 = vmax.f32 %v299, %v417
  %v422 = vld [vmem:[%s5] sm:$0xf]
  %v423 = vld [vmem:[%s5 + $0x4] sm:$0xf]
  %v424 = vld [vmem:[%s5 + $0x8] sm:$0xf]
  %v425 = vld [vmem:[%s5 + $0xc] sm:$0xf]
  %v426 = vld [vmem:[%s5 + $0x10] sm:$0xf]
  %v427 = vld [vmem:[%s5 + $0x14] sm:$0xf]
  %v428 = vld [vmem:[%s5 + $0x18] sm:$0xf]
  %v429 = vld [vmem:[%s5 + $0x1c] sm:$0xf]
  %v430 = vld [vmem:[%s5 + $0x20] sm:$0xf]
  %v431 = vld [vmem:[%s5 + $0x24] sm:$0xf]
  %v432 = vld [vmem:[%s5 + $0x28] sm:$0xf]
  %v433 = vld [vmem:[%s5 + $0x2c] sm:$0xf]
  %v434 = vld [vmem:[%s5 + $0x30] sm:$0xf]
  %v435 = vld [vmem:[%s5 + $0x34] sm:$0xf]
  %v436 = vld [vmem:[%s5 + $0x38] sm:$0xf]
  %v437 = vld [vmem:[%s5 + $0x3c] sm:$0xf]
  %v438 = vld [vmem:[%s5 + $0x40] sm:$0xf]
  %v439 = vld [vmem:[%s5 + $0x44] sm:$0xf]
  %v440 = vld [vmem:[%s5 + $0x48] sm:$0x7]
  %v460 = vunpack.c.l.b16 %v422
  %v461 = vunpack.c.l.b16 %v423
  %v462 = vunpack.c.l.b16 %v424
  %v463 = vunpack.c.l.b16 %v425
  %v464 = vunpack.c.l.b16 %v426
  %v465 = vunpack.c.l.b16 %v427
  %v466 = vunpack.c.l.b16 %v428
  %v467 = vunpack.c.l.b16 %v429
  %v468 = vunpack.c.l.b16 %v430
  %v469 = vunpack.c.l.b16 %v431
  %v470 = vunpack.c.l.b16 %v432
  %v471 = vunpack.c.l.b16 %v433
  %v472 = vunpack.c.l.b16 %v434
  %v473 = vunpack.c.l.b16 %v435
  %v474 = vunpack.c.l.b16 %v436
  %v475 = vunpack.c.l.b16 %v437
  %v476 = vunpack.c.l.b16 %v438
  %v477 = vunpack.c.l.b16 %v439
  %v478 = vunpack.c.l.b16 %v440
  %v479 = vpack.c.b16 %v461, %v460
  %v480 = vpack.c.b16 %v463, %v462
  %v481 = vpack.c.b16 %v465, %v464
  %v482 = vpack.c.b16 %v467, %v466
  %v483 = vpack.c.b16 %v469, %v468
  %v484 = vpack.c.b16 %v471, %v470
  %v485 = vpack.c.b16 %v473, %v472
  %v486 = vpack.c.b16 %v475, %v474
  %v487 = vpack.c.b16 %v477, %v476
  %v488 = vpack.c.b16 %v478, %v478
  %v499 = vsel %vm133, %v488, 0
  %501 = vmatprep.subr.bf16.mxu0 0
  %502 = vmatpush1.bf16.msra.mxu0 %v486
  %503 = vmatprep.subr.bf16.mxu0 0
  %504 = vmatpush1.bf16.msra.mxu0 %v485
  %505 = vmatprep.subr.bf16.mxu0 0
  %506 = vmatpush1.bf16.msra.mxu0 %v484
  %507 = vmatprep.subr.bf16.mxu0 0
  %508 = vmatpush1.bf16.msra.mxu0 %v483
  %509 = vmatprep.subr.bf16.mxu0 0
  %510 = vmatpush1.bf16.msra.mxu0 %v482
  %511 = vmatprep.subr.bf16.mxu0 0
  %512 = vmatpush1.bf16.msra.mxu0 %v481
  %513 = vmatprep.subr.bf16.mxu0 0
  %514 = vmatpush1.bf16.msra.mxu0 %v480
  %515 = vmatprep.subr.bf16.mxu0 0
  %516 = vmatpush1.bf16.msra.mxu0 %v479
  %517 = vmatprep.subr.bf16.mxu0 0
  %518 = vmatpush2.bf16.msra.mxu0 0
  %519 = vmatprep.subr.bf16.mxu0 0
  %520 = vmatpush2.bf16.msra.mxu0 0
  %521 = vmatprep.subr.bf16.mxu0 0
  %522 = vmatpush2.bf16.msra.mxu0 0
  %523 = vmatprep.subr.bf16.mxu0 0
  %524 = vmatpush2.bf16.msra.mxu0 0
  %525 = vmatprep.subr.bf16.mxu0 0
  %526 = vmatpush2.bf16.msra.mxu0 0
  %527 = vmatprep.subr.bf16.mxu0 0
  %528 = vmatpush2.bf16.msra.mxu0 0
  %529 = vmatprep.subr.bf16.mxu0 0
  %530 = vmatpush2.bf16.msra.mxu0 %v499
  %531 = vmatprep.subr.bf16.mxu0 0
  %532 = vmatpush2.bf16.msra.mxu0 %v487
  %533 = vmatprep.mubr.bf16.mxu0 %v131
  %534 = vmatmul.mubr.bf16.gmra.mxu0 %v69
  %v535 = vpop.f32.mrf.mxu0
  %v536 = vadd.f32 0.0, %v535
  %v537 = vpop.f32.mrf.mxu0
  %v538 = vpop.f32.mrf.mxu0
  %v539 = vadd.f32 0.0, %v538
  %v540 = vpop.f32.mrf.mxu0
  %541 = vdwg.mxu0
  %v542 = vmax.f32 %v420, %v536
  %v543 = vmax.f32 %v421, %v539
  %v544 = vld [vmem:[%s1] sm:$0xff]
  %v545 = vld [vmem:[%s1 + $0x8] sm:$0xff]
  %547 = vset.pattern.permute.xlu0 0
  %548 = vperm.xlu0 %547, %v544
  %v549 = vpop.permute.xlu0 %548
  %552 = vset.pattern.permute.xlu0 0
  %553 = vperm.xlu0 %552, %v545
  %v554 = vpop.permute.xlu0 %553
  %v556 = vadd.f32 %v542, %v549
  %v557 = vadd.f32 %v543, %v554
  %v558 = vmax.f32 %v556, 0.0
  %v559 = vmax.f32 %v557, 0.0
  %v560 = vpack.c.bf16 %v559, %v558
  %562 = vrot.lane.b32.xlu0 %v560, 126
  %v563 = vpop.permute.xlu0 %562
  %565 = vrot.lane.b32.xlu0 %v560, 124
  %v566 = vpop.permute.xlu0 %565
  %568 = vrot.lane.b32.xlu0 %v560, 122
  %v569 = vpop.permute.xlu0 %568
  %571 = vrot.lane.b32.xlu0 %v560, 120
  %v572 = vpop.permute.xlu0 %571
  %574 = vrot.lane.b32.xlu0 %v560, 118
  %v575 = vpop.permute.xlu0 %574
  %577 = vrot.lane.b32.xlu0 %v560, 116
  %v578 = vpop.permute.xlu0 %577
  %580 = vrot.lane.b32.xlu0 %v560, 114
  %v581 = vpop.permute.xlu0 %580
  %583 = vrot.lane.b32.xlu0 %v560, 112
  %v584 = vpop.permute.xlu0 %583
  %586 = vrot.lane.b32.xlu0 %v560, 110
  %v587 = vpop.permute.xlu0 %586
  %589 = vrot.lane.b32.xlu0 %v560, 108
  %v590 = vpop.permute.xlu0 %589
  %592 = vrot.lane.b32.xlu0 %v560, 106
  %v593 = vpop.permute.xlu0 %592
  %595 = vrot.lane.b32.xlu0 %v560, 104
  %v596 = vpop.permute.xlu0 %595
  %598 = vrot.lane.b32.xlu0 %v560, 102
  %v599 = vpop.permute.xlu0 %598
  %601 = vrot.lane.b32.xlu0 %v560, 100
  %v602 = vpop.permute.xlu0 %601
  %604 = vrot.lane.b32.xlu0 %v560, 98
  %v605 = vpop.permute.xlu0 %604
  %607 = vrot.lane.b32.xlu0 %v560, 96
  %v608 = vpop.permute.xlu0 %607
  %609 = vrot.lane.b32.xlu0 %v563, 96
  %v610 = vpop.permute.xlu0 %609
  %611 = vrot.lane.b32.xlu0 %v566, 96
  %v612 = vpop.permute.xlu0 %611
  %613 = vrot.lane.b32.xlu0 %v569, 96
  %v614 = vpop.permute.xlu0 %613
  %615 = vrot.lane.b32.xlu0 %v572, 96
  %v616 = vpop.permute.xlu0 %615
  %617 = vrot.lane.b32.xlu0 %v575, 96
  %v618 = vpop.permute.xlu0 %617
  %619 = vrot.lane.b32.xlu0 %v578, 96
  %v620 = vpop.permute.xlu0 %619
  %621 = vrot.lane.b32.xlu0 %v581, 96
  %v622 = vpop.permute.xlu0 %621
  %623 = vrot.lane.b32.xlu0 %v584, 96
  %v624 = vpop.permute.xlu0 %623
  %v634 = vld [vmem:[%s6] sm:$0xff]
  %v635 = vld [vmem:[%s6 + $0x8] sm:$0xff]
  %v636 = vld [vmem:[%s6 + $0x10] sm:$0xff]
  %v637 = vld [vmem:[%s6 + $0x18] sm:$0xff]
  %v638 = vld [vmem:[%s6 + $0x20] sm:$0xff]
  %v639 = vld [vmem:[%s6 + $0x28] sm:$0xff]
  %v640 = vld [vmem:[%s6 + $0x30] sm:$0xff]
  %v641 = vld [vmem:[%s6 + $0x38] sm:$0xff]
  %v642 = vld [vmem:[%s6 + $0x40] sm:$0xff]
  %v643 = vld [vmem:[%s6 + $0x48] sm:$0xff]
  %v644 = vld [vmem:[%s6 + $0x50] sm:$0xff]
  %v645 = vld [vmem:[%s6 + $0x58] sm:$0xff]
  %v646 = vld [vmem:[%s6 + $0x60] sm:$0xff]
  %v647 = vld [vmem:[%s6 + $0x68] sm:$0xff]
  %v648 = vld [vmem:[%s6 + $0x70] sm:$0xff]
  %v649 = vld [vmem:[%s6 + $0x78] sm:$0xff]
  %v650 = vld [vmem:[%s6 + $0x80] sm:$0xff]
  %v651 = vld [vmem:[%s6 + $0x88] sm:$0xff]
  %v652 = vld [vmem:[%s6 + $0x90] sm:$0xff]
  %v653 = vld [vmem:[%s6 + $0x98] sm:$0xff]
  %v654 = vld [vmem:[%s6 + $0xa0] sm:$0xff]
  %v655 = vld [vmem:[%s6 + $0xa8] sm:$0xff]
  %v656 = vld [vmem:[%s6 + $0xb0] sm:$0xff]
  %v657 = vld [vmem:[%s6 + $0xb8] sm:$0xff]
  %v658 = vld [vmem:[%s6 + $0xc0] sm:$0xff]
  %v659 = vld [vmem:[%s6 + $0xc8] sm:$0xff]
  %v660 = vld [vmem:[%s6 + $0xd0] sm:$0xff]
  %v661 = vld [vmem:[%s6 + $0xd8] sm:$0xff]
  %v662 = vld [vmem:[%s6 + $0xe0] sm:$0xff]
  %v663 = vld [vmem:[%s6 + $0xe8] sm:$0xff]
  %v664 = vld [vmem:[%s6 + $0xf0] sm:$0xff]
  %v665 = vld [vmem:[%s6 + $0xf8] sm:$0xff]
  %v666 = vld [vmem:[%s7] sm:$0xff]
  %v667 = vld [vmem:[%s7 + $0x8] sm:$0xff]
  %v668 = vld [vmem:[%s7 + $0x10] sm:$0xff]
  %v669 = vld [vmem:[%s7 + $0x18] sm:$0xff]
  %v670 = vld [vmem:[%s7 + $0x20] sm:$0xff]
  %v671 = vld [vmem:[%s7 + $0x28] sm:$0xff]
  %v672 = vld [vmem:[%s7 + $0x30] sm:$0xff]
  %v673 = vld [vmem:[%s7 + $0x38] sm:$0xff]
  %v674 = vld [vmem:[%s7 + $0x40] sm:$0xff]
  %v675 = vld [vmem:[%s7 + $0x48] sm:$0xff]
  %v676 = vld [vmem:[%s7 + $0x50] sm:$0xff]
  %v677 = vld [vmem:[%s7 + $0x58] sm:$0xff]
  %v678 = vld [vmem:[%s7 + $0x60] sm:$0xff]
  %v679 = vld [vmem:[%s7 + $0x68] sm:$0xff]
  %v680 = vld [vmem:[%s7 + $0x70] sm:$0xff]
  %v681 = vld [vmem:[%s7 + $0x78] sm:$0xff]
  %683 = vset.pattern.permute.xlu0 0
  %684 = vperm.xlu0 %683, %v666
  %v685 = vpop.permute.xlu0 %684
  %688 = vset.pattern.permute.xlu0 0
  %689 = vperm.xlu0 %688, %v667
  %v690 = vpop.permute.xlu0 %689
  %693 = vset.pattern.permute.xlu0 0
  %694 = vperm.xlu0 %693, %v668
  %v695 = vpop.permute.xlu0 %694
  %698 = vset.pattern.permute.xlu0 0
  %699 = vperm.xlu0 %698, %v669
  %v700 = vpop.permute.xlu0 %699
  %703 = vset.pattern.permute.xlu0 0
  %704 = vperm.xlu0 %703, %v670
  %v705 = vpop.permute.xlu0 %704
  %708 = vset.pattern.permute.xlu0 0
  %709 = vperm.xlu0 %708, %v671
  %v710 = vpop.permute.xlu0 %709
  %713 = vset.pattern.permute.xlu0 0
  %714 = vperm.xlu0 %713, %v672
  %v715 = vpop.permute.xlu0 %714
  %718 = vset.pattern.permute.xlu0 0
  %719 = vperm.xlu0 %718, %v673
  %v720 = vpop.permute.xlu0 %719
  %723 = vset.pattern.permute.xlu0 0
  %724 = vperm.xlu0 %723, %v674
  %v725 = vpop.permute.xlu0 %724
  %728 = vset.pattern.permute.xlu0 0
  %729 = vperm.xlu0 %728, %v675
  %v730 = vpop.permute.xlu0 %729
  %733 = vset.pattern.permute.xlu0 0
  %734 = vperm.xlu0 %733, %v676
  %v735 = vpop.permute.xlu0 %734
  %738 = vset.pattern.permute.xlu0 0
  %739 = vperm.xlu0 %738, %v677
  %v740 = vpop.permute.xlu0 %739
  %743 = vset.pattern.permute.xlu0 0
  %744 = vperm.xlu0 %743, %v678
  %v745 = vpop.permute.xlu0 %744
  %748 = vset.pattern.permute.xlu0 0
  %749 = vperm.xlu0 %748, %v679
  %v750 = vpop.permute.xlu0 %749
  %753 = vset.pattern.permute.xlu0 0
  %754 = vperm.xlu0 %753, %v680
  %v755 = vpop.permute.xlu0 %754
  %758 = vset.pattern.permute.xlu0 0
  %759 = vperm.xlu0 %758, %v681
  %v760 = vpop.permute.xlu0 %759
  %v794 = vunpack.c.l.b16 %v634
  %v795 = vunpack.c.h.b16 %v634
  %v796 = vunpack.c.l.b16 %v635
  %v797 = vunpack.c.h.b16 %v635
  %v798 = vunpack.c.l.b16 %v636
  %v799 = vunpack.c.h.b16 %v636
  %v800 = vunpack.c.l.b16 %v637
  %v801 = vunpack.c.h.b16 %v637
  %v802 = vunpack.c.l.b16 %v638
  %v803 = vunpack.c.h.b16 %v638
  %v804 = vunpack.c.l.b16 %v639
  %v805 = vunpack.c.h.b16 %v639
  %v806 = vunpack.c.l.b16 %v640
  %v807 = vunpack.c.h.b16 %v640
  %v808 = vunpack.c.l.b16 %v641
  %v809 = vunpack.c.h.b16 %v641
  %v810 = vunpack.c.l.b16 %v642
  %v811 = vunpack.c.h.b16 %v642
  %v812 = vunpack.c.l.b16 %v643
  %v813 = vunpack.c.h.b16 %v643
  %v814 = vunpack.c.l.b16 %v644
  %v815 = vunpack.c.h.b16 %v644
  %v816 = vunpack.c.l.b16 %v645
  %v817 = vunpack.c.h.b16 %v645
  %v818 = vunpack.c.l.b16 %v646
  %v819 = vunpack.c.h.b16 %v646
  %v820 = vunpack.c.l.b16 %v647
  %v821 = vunpack.c.h.b16 %v647
  %v822 = vunpack.c.l.b16 %v648
  %v823 = vunpack.c.h.b16 %v648
  %v824 = vunpack.c.l.b16 %v649
  %v825 = vunpack.c.h.b16 %v649
  %v826 = vunpack.c.l.b16 %v650
  %v827 = vunpack.c.h.b16 %v650
  %v828 = vunpack.c.l.b16 %v651
  %v829 = vunpack.c.h.b16 %v651
  %v830 = vunpack.c.l.b16 %v652
  %v831 = vunpack.c.h.b16 %v652
  %v832 = vunpack.c.l.b16 %v653
  %v833 = vunpack.c.h.b16 %v653
  %v834 = vunpack.c.l.b16 %v654
  %v835 = vunpack.c.h.b16 %v654
  %v836 = vunpack.c.l.b16 %v655
  %v837 = vunpack.c.h.b16 %v655
  %v838 = vunpack.c.l.b16 %v656
  %v839 = vunpack.c.h.b16 %v656
  %v840 = vunpack.c.l.b16 %v657
  %v841 = vunpack.c.h.b16 %v657
  %v842 = vunpack.c.l.b16 %v658
  %v843 = vunpack.c.h.b16 %v658
  %v844 = vunpack.c.l.b16 %v659
  %v845 = vunpack.c.h.b16 %v659
  %v846 = vunpack.c.l.b16 %v660
  %v847 = vunpack.c.h.b16 %v660
  %v848 = vunpack.c.l.b16 %v661
  %v849 = vunpack.c.h.b16 %v661
  %v850 = vunpack.c.l.b16 %v662
  %v851 = vunpack.c.h.b16 %v662
  %v852 = vunpack.c.l.b16 %v663
  %v853 = vunpack.c.h.b16 %v663
  %v854 = vunpack.c.l.b16 %v664
  %v855 = vunpack.c.h.b16 %v664
  %v856 = vunpack.c.l.b16 %v665
  %v857 = vunpack.c.h.b16 %v665
  %v858 = vpack.c.b16 %v798, %v794
  %v859 = vpack.c.b16 %v799, %v795
  %v860 = vpack.c.b16 %v800, %v796
  %v861 = vpack.c.b16 %v801, %v797
  %v862 = vpack.c.b16 %v806, %v802
  %v863 = vpack.c.b16 %v807, %v803
  %v864 = vpack.c.b16 %v808, %v804
  %v865 = vpack.c.b16 %v809, %v805
  %v866 = vpack.c.b16 %v814, %v810
  %v867 = vpack.c.b16 %v815, %v811
  %v868 = vpack.c.b16 %v816, %v812
  %v869 = vpack.c.b16 %v817, %v813
  %v870 = vpack.c.b16 %v822, %v818
  %v871 = vpack.c.b16 %v823, %v819
  %v872 = vpack.c.b16 %v824, %v820
  %v873 = vpack.c.b16 %v825, %v821
  %v874 = vpack.c.b16 %v830, %v826
  %v875 = vpack.c.b16 %v831, %v827
  %v876 = vpack.c.b16 %v832, %v828
  %v877 = vpack.c.b16 %v833, %v829
  %v878 = vpack.c.b16 %v838, %v834
  %v879 = vpack.c.b16 %v839, %v835
  %v880 = vpack.c.b16 %v840, %v836
  %v881 = vpack.c.b16 %v841, %v837
  %v882 = vpack.c.b16 %v846, %v842
  %v883 = vpack.c.b16 %v847, %v843
  %v884 = vpack.c.b16 %v848, %v844
  %v885 = vpack.c.b16 %v849, %v845
  %v886 = vpack.c.b16 %v854, %v850
  %v887 = vpack.c.b16 %v855, %v851
  %v888 = vpack.c.b16 %v856, %v852
  %v889 = vpack.c.b16 %v857, %v853
  %vm914 = vcmask 130048
  %v916 = vsel %vm914, %v861, 0
  %v919 = vsel %vm914, %v865, 0
  %v922 = vsel %vm914, %v869, 0
  %v925 = vsel %vm914, %v873, 0
  %v928 = vsel %vm914, %v877, 0
  %v931 = vsel %vm914, %v881, 0
  %v934 = vsel %vm914, %v885, 0
  %v937 = vsel %vm914, %v889, 0
  %939 = vmatprep.subr.bf16.mxu0 0
  %940 = vmatpush1.bf16.msra.mxu0 %v581
  %941 = vmatprep.subr.bf16.mxu0 0
  %942 = vmatpush1.bf16.msra.mxu0 %v578
  %943 = vmatprep.subr.bf16.mxu0 0
  %944 = vmatpush1.bf16.msra.mxu0 %v575
  %945 = vmatprep.subr.bf16.mxu0 0
  %946 = vmatpush1.bf16.msra.mxu0 %v572
  %947 = vmatprep.subr.bf16.mxu0 0
  %948 = vmatpush1.bf16.msra.mxu0 %v569
  %949 = vmatprep.subr.bf16.mxu0 0
  %950 = vmatpush1.bf16.msra.mxu0 %v566
  %951 = vmatprep.subr.bf16.mxu0 0
  %952 = vmatpush1.bf16.msra.mxu0 %v563
  %953 = vmatprep.subr.bf16.mxu0 0
  %954 = vmatpush1.bf16.msra.mxu0 %v560
  %955 = vmatprep.subr.bf16.mxu0 0
  %956 = vmatpush2.bf16.msra.mxu0 %v605
  %957 = vmatprep.subr.bf16.mxu0 0
  %958 = vmatpush2.bf16.msra.mxu0 %v602
  %959 = vmatprep.subr.bf16.mxu0 0
  %960 = vmatpush2.bf16.msra.mxu0 %v599
  %961 = vmatprep.subr.bf16.mxu0 0
  %962 = vmatpush2.bf16.msra.mxu0 %v596
  %963 = vmatprep.subr.bf16.mxu0 0
  %964 = vmatpush2.bf16.msra.mxu0 %v593
  %965 = vmatprep.subr.bf16.mxu0 0
  %966 = vmatpush2.bf16.msra.mxu0 %v590
  %967 = vmatprep.subr.bf16.mxu0 0
  %968 = vmatpush2.bf16.msra.mxu0 %v587
  %969 = vmatprep.subr.bf16.mxu0 0
  %970 = vmatpush2.bf16.msra.mxu0 %v584
  %971 = vmatprep.mubr.bf16.mxu0 %v859
  %972 = vmatmul.mubr.bf16.gmra.mxu0 %v858
  %v973 = vpop.f32.mrf.mxu0
  %v974 = vadd.f32 %v685, %v973
  %v975 = vpop.f32.mrf.mxu0
  %v976 = vpop.f32.mrf.mxu0
  %v977 = vadd.f32 %v690, %v976
  %v978 = vpop.f32.mrf.mxu0
  %979 = vmatprep.mubr.bf16.mxu0 %v863
  %980 = vmatmul.mubr.bf16.gmra.mxu0 %v862
  %v981 = vpop.f32.mrf.mxu0
  %v982 = vadd.f32 %v695, %v981
  %v983 = vpop.f32.mrf.mxu0
  %v984 = vpop.f32.mrf.mxu0
  %v985 = vadd.f32 %v700, %v984
  %v986 = vpop.f32.mrf.mxu0
  %987 = vmatprep.mubr.bf16.mxu0 %v867
  %988 = vmatmul.mubr.bf16.gmra.mxu0 %v866
  %v989 = vpop.f32.mrf.mxu0
  %v990 = vadd.f32 %v705, %v989
  %v991 = vpop.f32.mrf.mxu0
  %v992 = vpop.f32.mrf.mxu0
  %v993 = vadd.f32 %v710, %v992
  %v994 = vpop.f32.mrf.mxu0
  %995 = vmatprep.mubr.bf16.mxu0 %v871
  %996 = vmatmul.mubr.bf16.gmra.mxu0 %v870
  %v997 = vpop.f32.mrf.mxu0
  %v998 = vadd.f32 %v715, %v997
  %v999 = vpop.f32.mrf.mxu0
  %v1000 = vpop.f32.mrf.mxu0
  %v1001 = vadd.f32 %v720, %v1000
  %v1002 = vpop.f32.mrf.mxu0
  %1003 = vmatprep.mubr.bf16.mxu0 %v875
  %1004 = vmatmul.mubr.bf16.gmra.mxu0 %v874
  %v1005 = vpop.f32.mrf.mxu0
  %v1006 = vadd.f32 %v725, %v1005
  %v1007 = vpop.f32.mrf.mxu0
  %v1008 = vpop.f32.mrf.mxu0
  %v1009 = vadd.f32 %v730, %v1008
  %v1010 = vpop.f32.mrf.mxu0
  %1011 = vmatprep.mubr.bf16.mxu0 %v879
  %1012 = vmatmul.mubr.bf16.gmra.mxu0 %v878
  %v1013 = vpop.f32.mrf.mxu0
  %v1014 = vadd.f32 %v735, %v1013
  %v1015 = vpop.f32.mrf.mxu0
  %v1016 = vpop.f32.mrf.mxu0
  %v1017 = vadd.f32 %v740, %v1016
  %v1018 = vpop.f32.mrf.mxu0
  %1019 = vmatprep.mubr.bf16.mxu0 %v883
  %1020 = vmatmul.mubr.bf16.gmra.mxu0 %v882
  %v1021 = vpop.f32.mrf.mxu0
  %v1022 = vadd.f32 %v745, %v1021
  %v1023 = vpop.f32.mrf.mxu0
  %v1024 = vpop.f32.mrf.mxu0
  %v1025 = vadd.f32 %v750, %v1024
  %v1026 = vpop.f32.mrf.mxu0
  %1027 = vmatprep.mubr.bf16.mxu0 %v887
  %1028 = vmatmul.mubr.bf16.gmra.mxu0 %v886
  %v1029 = vpop.f32.mrf.mxu0
  %v1030 = vadd.f32 %v755, %v1029
  %v1031 = vpop.f32.mrf.mxu0
  %v1032 = vpop.f32.mrf.mxu0
  %v1033 = vadd.f32 %v760, %v1032
  %v1034 = vpop.f32.mrf.mxu0
  %1035 = vdwg.mxu0
  %1036 = vmatprep.subr.bf16.mxu0 0
  %1037 = vmatpush1.bf16.msra.mxu0 %v622
  %1038 = vmatprep.subr.bf16.mxu0 0
  %1039 = vmatpush1.bf16.msra.mxu0 %v620
  %1040 = vmatprep.subr.bf16.mxu0 0
  %1041 = vmatpush1.bf16.msra.mxu0 %v618
  %1042 = vmatprep.subr.bf16.mxu0 0
  %1043 = vmatpush1.bf16.msra.mxu0 %v616
  %1044 = vmatprep.subr.bf16.mxu0 0
  %1045 = vmatpush1.bf16.msra.mxu0 %v614
  %1046 = vmatprep.subr.bf16.mxu0 0
  %1047 = vmatpush1.bf16.msra.mxu0 %v612
  %1048 = vmatprep.subr.bf16.mxu0 0
  %1049 = vmatpush1.bf16.msra.mxu0 %v610
  %1050 = vmatprep.subr.bf16.mxu0 0
  %1051 = vmatpush1.bf16.msra.mxu0 %v608
  %1052 = vmatprep.subr.bf16.mxu0 0
  %1053 = vmatpush2.bf16.msra.mxu0 0
  %1054 = vmatprep.subr.bf16.mxu0 0
  %1055 = vmatpush2.bf16.msra.mxu0 0
  %1056 = vmatprep.subr.bf16.mxu0 0
  %1057 = vmatpush2.bf16.msra.mxu0 0
  %1058 = vmatprep.subr.bf16.mxu0 0
  %1059 = vmatpush2.bf16.msra.mxu0 0
  %1060 = vmatprep.subr.bf16.mxu0 0
  %1061 = vmatpush2.bf16.msra.mxu0 0
  %1062 = vmatprep.subr.bf16.mxu0 0
  %1063 = vmatpush2.bf16.msra.mxu0 0
  %1064 = vmatprep.subr.bf16.mxu0 0
  %1065 = vmatpush2.bf16.msra.mxu0 0
  %1066 = vmatprep.subr.bf16.mxu0 0
  %1067 = vmatpush2.bf16.msra.mxu0 %v624
  %1068 = vmatprep.mubr.bf16.mxu0 %v916
  %1069 = vmatmul.mubr.bf16.gmra.mxu0 %v860
  %v1070 = vpop.f32.mrf.mxu0
  %v1071 = vadd.f32 %v974, %v1070
  %v1072 = vpop.f32.mrf.mxu0
  %v1073 = vpop.f32.mrf.mxu0
  %v1074 = vadd.f32 %v977, %v1073
  %v1075 = vpop.f32.mrf.mxu0
  %1076 = vmatprep.mubr.bf16.mxu0 %v919
  %1077 = vmatmul.mubr.bf16.gmra.mxu0 %v864
  %v1078 = vpop.f32.mrf.mxu0
  %v1079 = vadd.f32 %v982, %v1078
  %v1080 = vpop.f32.mrf.mxu0
  %v1081 = vpop.f32.mrf.mxu0
  %v1082 = vadd.f32 %v985, %v1081
  %v1083 = vpop.f32.mrf.mxu0
  %1084 = vmatprep.mubr.bf16.mxu0 %v922
  %1085 = vmatmul.mubr.bf16.gmra.mxu0 %v868
  %v1086 = vpop.f32.mrf.mxu0
  %v1087 = vadd.f32 %v990, %v1086
  %v1088 = vpop.f32.mrf.mxu0
  %v1089 = vpop.f32.mrf.mxu0
  %v1090 = vadd.f32 %v993, %v1089
  %v1091 = vpop.f32.mrf.mxu0
  %1092 = vmatprep.mubr.bf16.mxu0 %v925
  %1093 = vmatmul.mubr.bf16.gmra.mxu0 %v872
  %v1094 = vpop.f32.mrf.mxu0
  %v1095 = vadd.f32 %v998, %v1094
  %v1096 = vpop.f32.mrf.mxu0
  %v1097 = vpop.f32.mrf.mxu0
  %v1098 = vadd.f32 %v1001, %v1097
  %v1099 = vpop.f32.mrf.mxu0
  %1100 = vmatprep.mubr.bf16.mxu0 %v928
  %1101 = vmatmul.mubr.bf16.gmra.mxu0 %v876
  %v1102 = vpop.f32.mrf.mxu0
  %v1103 = vadd.f32 %v1006, %v1102
  %v1104 = vpop.f32.mrf.mxu0
  %v1105 = vpop.f32.mrf.mxu0
  %v1106 = vadd.f32 %v1009, %v1105
  %v1107 = vpop.f32.mrf.mxu0
  %1108 = vmatprep.mubr.bf16.mxu0 %v931
  %1109 = vmatmul.mubr.bf16.gmra.mxu0 %v880
  %v1110 = vpop.f32.mrf.mxu0
  %v1111 = vadd.f32 %v1014, %v1110
  %v1112 = vpop.f32.mrf.mxu0
  %v1113 = vpop.f32.mrf.mxu0
  %v1114 = vadd.f32 %v1017, %v1113
  %v1115 = vpop.f32.mrf.mxu0
  %1116 = vmatprep.mubr.bf16.mxu0 %v934
  %1117 = vmatmul.mubr.bf16.gmra.mxu0 %v884
  %v1118 = vpop.f32.mrf.mxu0
  %v1119 = vadd.f32 %v1022, %v1118
  %v1120 = vpop.f32.mrf.mxu0
  %v1121 = vpop.f32.mrf.mxu0
  %v1122 = vadd.f32 %v1025, %v1121
  %v1123 = vpop.f32.mrf.mxu0
  %1124 = vmatprep.mubr.bf16.mxu0 %v937
  %1125 = vmatmul.mubr.bf16.gmra.mxu0 %v888
  %v1126 = vpop.f32.mrf.mxu0
  %v1127 = vadd.f32 %v1030, %v1126
  %v1128 = vpop.f32.mrf.mxu0
  %v1129 = vpop.f32.mrf.mxu0
  %v1130 = vadd.f32 %v1033, %v1129
  %v1131 = vpop.f32.mrf.mxu0
  %1132 = vdwg.mxu0
  %v1133 = vmax.f32 %v1071, 0.0
  %v1134 = vmax.f32 %v1074, 0.0
  %v1135 = vmax.f32 %v1079, 0.0
  %v1136 = vmax.f32 %v1082, 0.0
  %v1137 = vmax.f32 %v1087, 0.0
  %v1138 = vmax.f32 %v1090, 0.0
  %v1139 = vmax.f32 %v1095, 0.0
  %v1140 = vmax.f32 %v1098, 0.0
  %v1141 = vmax.f32 %v1103, 0.0
  %v1142 = vmax.f32 %v1106, 0.0
  %v1143 = vmax.f32 %v1111, 0.0
  %v1144 = vmax.f32 %v1114, 0.0
  %v1145 = vmax.f32 %v1119, 0.0
  %v1146 = vmax.f32 %v1122, 0.0
  %v1147 = vmax.f32 %v1127, 0.0
  %v1148 = vmax.f32 %v1130, 0.0
  %v1149 = vld [vmem:[%s8] sm:$0xf]
  %v1150 = vld [vmem:[%s8 + $0x4] sm:$0xf]
  %v1151 = vld [vmem:[%s8 + $0x8] sm:$0xf]
  %v1152 = vld [vmem:[%s8 + $0xc] sm:$0xf]
  %v1153 = vld [vmem:[%s8 + $0x10] sm:$0xf]
  %v1154 = vld [vmem:[%s8 + $0x14] sm:$0xf]
  %v1155 = vld [vmem:[%s8 + $0x18] sm:$0xf]
  %v1156 = vld [vmem:[%s8 + $0x1c] sm:$0xf]
  %v1157 = vld [vmem:[%s8 + $0x20] sm:$0xf]
  %v1158 = vld [vmem:[%s8 + $0x24] sm:$0xf]
  %v1159 = vld [vmem:[%s8 + $0x28] sm:$0xf]
  %v1160 = vld [vmem:[%s8 + $0x2c] sm:$0xf]
  %v1161 = vld [vmem:[%s8 + $0x30] sm:$0xf]
  %v1162 = vld [vmem:[%s8 + $0x34] sm:$0xf]
  %v1163 = vld [vmem:[%s8 + $0x38] sm:$0xf]
  %v1164 = vld [vmem:[%s8 + $0x3c] sm:$0xf]
  %v1165 = vpack.c.bf16 %v1134, %v1133
  %v1166 = vpack.c.bf16 %v1136, %v1135
  %v1167 = vpack.c.bf16 %v1138, %v1137
  %v1168 = vpack.c.bf16 %v1140, %v1139
  %v1169 = vpack.c.bf16 %v1142, %v1141
  %v1170 = vpack.c.bf16 %v1144, %v1143
  %v1171 = vpack.c.bf16 %v1146, %v1145
  %v1172 = vpack.c.bf16 %v1148, %v1147
  %v1173 = vld [vmem:[%s9] sm:$0xff]
  %v1174 = vld [vmem:[%s9 + $0x8] sm:$0xff]
  %v1175 = vld [vmem:[%s9 + $0x10] sm:$0xff]
  %v1176 = vld [vmem:[%s9 + $0x18] sm:$0xff]
  %v1177 = vld [vmem:[%s9 + $0x20] sm:$0xff]
  %v1178 = vld [vmem:[%s9 + $0x28] sm:$0xff]
  %v1179 = vld [vmem:[%s9 + $0x30] sm:$0xff]
  %v1180 = vld [vmem:[%s9 + $0x38] sm:$0xff]
  %v1181 = vld [vmem:[%s9 + $0x40] sm:$0xff]
  %v1182 = vld [vmem:[%s9 + $0x48] sm:$0xff]
  %v1183 = vld [vmem:[%s9 + $0x50] sm:$0xff]
  %v1184 = vld [vmem:[%s9 + $0x58] sm:$0xff]
  %v1185 = vld [vmem:[%s9 + $0x60] sm:$0xff]
  %v1186 = vld [vmem:[%s9 + $0x68] sm:$0xff]
  %v1187 = vld [vmem:[%s9 + $0x70] sm:$0xff]
  %v1188 = vld [vmem:[%s9 + $0x78] sm:$0xff]
  %1190 = vset.pattern.permute.xlu0 0
  %1191 = vperm.xlu0 %1190, %v1173
  %v1192 = vpop.permute.xlu0 %1191
  %1195 = vset.pattern.permute.xlu0 0
  %1196 = vperm.xlu0 %1195, %v1174
  %v1197 = vpop.permute.xlu0 %1196
  %1200 = vset.pattern.permute.xlu0 0
  %1201 = vperm.xlu0 %1200, %v1175
  %v1202 = vpop.permute.xlu0 %1201
  %1205 = vset.pattern.permute.xlu0 0
  %1206 = vperm.xlu0 %1205, %v1176
  %v1207 = vpop.permute.xlu0 %1206
  %1210 = vset.pattern.permute.xlu0 0
  %1211 = vperm.xlu0 %1210, %v1177
  %v1212 = vpop.permute.xlu0 %1211
  %1215 = vset.pattern.permute.xlu0 0
  %1216 = vperm.xlu0 %1215, %v1178
  %v1217 = vpop.permute.xlu0 %1216
  %1220 = vset.pattern.permute.xlu0 0
  %1221 = vperm.xlu0 %1220, %v1179
  %v1222 = vpop.permute.xlu0 %1221
  %1225 = vset.pattern.permute.xlu0 0
  %1226 = vperm.xlu0 %1225, %v1180
  %v1227 = vpop.permute.xlu0 %1226
  %1230 = vset.pattern.permute.xlu0 0
  %1231 = vperm.xlu0 %1230, %v1181
  %v1232 = vpop.permute.xlu0 %1231
  %1235 = vset.pattern.permute.xlu0 0
  %1236 = vperm.xlu0 %1235, %v1182
  %v1237 = vpop.permute.xlu0 %1236
  %1240 = vset.pattern.permute.xlu0 0
  %1241 = vperm.xlu0 %1240, %v1183
  %v1242 = vpop.permute.xlu0 %1241
  %1245 = vset.pattern.permute.xlu0 0
  %1246 = vperm.xlu0 %1245, %v1184
  %v1247 = vpop.permute.xlu0 %1246
  %1250 = vset.pattern.permute.xlu0 0
  %1251 = vperm.xlu0 %1250, %v1185
  %v1252 = vpop.permute.xlu0 %1251
  %1255 = vset.pattern.permute.xlu0 0
  %1256 = vperm.xlu0 %1255, %v1186
  %v1257 = vpop.permute.xlu0 %1256
  %1260 = vset.pattern.permute.xlu0 0
  %1261 = vperm.xlu0 %1260, %v1187
  %v1262 = vpop.permute.xlu0 %1261
  %1265 = vset.pattern.permute.xlu0 0
  %1266 = vperm.xlu0 %1265, %v1188
  %v1267 = vpop.permute.xlu0 %1266
  %v1285 = vunpack.c.l.b16 %v1149
  %v1286 = vunpack.c.l.b16 %v1150
  %v1287 = vunpack.c.l.b16 %v1151
  %v1288 = vunpack.c.l.b16 %v1152
  %v1289 = vunpack.c.l.b16 %v1153
  %v1290 = vunpack.c.l.b16 %v1154
  %v1291 = vunpack.c.l.b16 %v1155
  %v1292 = vunpack.c.l.b16 %v1156
  %v1293 = vunpack.c.l.b16 %v1157
  %v1294 = vunpack.c.l.b16 %v1158
  %v1295 = vunpack.c.l.b16 %v1159
  %v1296 = vunpack.c.l.b16 %v1160
  %v1297 = vunpack.c.l.b16 %v1161
  %v1298 = vunpack.c.l.b16 %v1162
  %v1299 = vunpack.c.l.b16 %v1163
  %v1300 = vunpack.c.l.b16 %v1164
  %v1301 = vpack.c.b16 %v1286, %v1285
  %v1302 = vpack.c.b16 %v1288, %v1287
  %v1303 = vpack.c.b16 %v1290, %v1289
  %v1304 = vpack.c.b16 %v1292, %v1291
  %v1305 = vpack.c.b16 %v1294, %v1293
  %v1306 = vpack.c.b16 %v1296, %v1295
  %v1307 = vpack.c.b16 %v1298, %v1297
  %v1308 = vpack.c.b16 %v1300, %v1299
  %1317 = vmatprep.subr.bf16.mxu0 0
  %1318 = vmatpush1.bf16.msra.mxu0 %v1172
  %1319 = vmatprep.subr.bf16.mxu0 0
  %1320 = vmatpush1.bf16.msra.mxu0 %v1171
  %1321 = vmatprep.subr.bf16.mxu0 0
  %1322 = vmatpush1.bf16.msra.mxu0 %v1170
  %1323 = vmatprep.subr.bf16.mxu0 0
  %1324 = vmatpush1.bf16.msra.mxu0 %v1169
  %1325 = vmatprep.subr.bf16.mxu0 0
  %1326 = vmatpush1.bf16.msra.mxu0 %v1168
  %1327 = vmatprep.subr.bf16.mxu0 0
  %1328 = vmatpush1.bf16.msra.mxu0 %v1167
  %1329 = vmatprep.subr.bf16.mxu0 0
  %1330 = vmatpush1.bf16.msra.mxu0 %v1166
  %1331 = vmatprep.subr.bf16.mxu0 0
  %1332 = vmatpush1.bf16.msra.mxu0 %v1165
  %1333 = vmatprep.subr.bf16.mxu0 0
  %1334 = vmatpush2.bf16.msra.mxu0 0
  %1335 = vmatprep.subr.bf16.mxu0 0
  %1336 = vmatpush2.bf16.msra.mxu0 0
  %1337 = vmatprep.subr.bf16.mxu0 0
  %1338 = vmatpush2.bf16.msra.mxu0 0
  %1339 = vmatprep.subr.bf16.mxu0 0
  %1340 = vmatpush2.bf16.msra.mxu0 0
  %1341 = vmatprep.subr.bf16.mxu0 0
  %1342 = vmatpush2.bf16.msra.mxu0 0
  %1343 = vmatprep.subr.bf16.mxu0 0
  %1344 = vmatpush2.bf16.msra.mxu0 0
  %1345 = vmatprep.subr.bf16.mxu0 0
  %1346 = vmatpush2.bf16.msra.mxu0 0
  %1347 = vmatprep.subr.bf16.mxu0 0
  %1348 = vmatpush2.bf16.msra.mxu0 0
  %1349 = vmatprep.mubr.bf16.mxu0 0
  %1350 = vmatmul.mubr.bf16.gmra.mxu0 %v1301
  %v1351 = vpop.f32.mrf.mxu0
  %v1352 = vadd.f32 %v1192, %v1351
  %v1353 = vpop.f32.mrf.mxu0
  %v1354 = vpop.f32.mrf.mxu0
  %v1355 = vadd.f32 %v1197, %v1354
  %v1356 = vpop.f32.mrf.mxu0
  %1357 = vmatprep.mubr.bf16.mxu0 0
  %1358 = vmatmul.mubr.bf16.gmra.mxu0 %v1302
  %v1359 = vpop.f32.mrf.mxu0
  %v1360 = vadd.f32 %v1202, %v1359
  %v1361 = vpop.f32.mrf.mxu0
  %v1362 = vpop.f32.mrf.mxu0
  %v1363 = vadd.f32 %v1207, %v1362
  %v1364 = vpop.f32.mrf.mxu0
  %1365 = vmatprep.mubr.bf16.mxu0 0
  %1366 = vmatmul.mubr.bf16.gmra.mxu0 %v1303
  %v1367 = vpop.f32.mrf.mxu0
  %v1368 = vadd.f32 %v1212, %v1367
  %v1369 = vpop.f32.mrf.mxu0
  %v1370 = vpop.f32.mrf.mxu0
  %v1371 = vadd.f32 %v1217, %v1370
  %v1372 = vpop.f32.mrf.mxu0
  %1373 = vmatprep.mubr.bf16.mxu0 0
  %1374 = vmatmul.mubr.bf16.gmra.mxu0 %v1304
  %v1375 = vpop.f32.mrf.mxu0
  %v1376 = vadd.f32 %v1222, %v1375
  %v1377 = vpop.f32.mrf.mxu0
  %v1378 = vpop.f32.mrf.mxu0
  %v1379 = vadd.f32 %v1227, %v1378
  %v1380 = vpop.f32.mrf.mxu0
  %1381 = vmatprep.mubr.bf16.mxu0 0
  %1382 = vmatmul.mubr.bf16.gmra.mxu0 %v1305
  %v1383 = vpop.f32.mrf.mxu0
  %v1384 = vadd.f32 %v1232, %v1383
  %v1385 = vpop.f32.mrf.mxu0
  %v1386 = vpop.f32.mrf.mxu0
  %v1387 = vadd.f32 %v1237, %v1386
  %v1388 = vpop.f32.mrf.mxu0
  %1389 = vmatprep.mubr.bf16.mxu0 0
  %1390 = vmatmul.mubr.bf16.gmra.mxu0 %v1306
  %v1391 = vpop.f32.mrf.mxu0
  %v1392 = vadd.f32 %v1242, %v1391
  %v1393 = vpop.f32.mrf.mxu0
  %v1394 = vpop.f32.mrf.mxu0
  %v1395 = vadd.f32 %v1247, %v1394
  %v1396 = vpop.f32.mrf.mxu0
  %1397 = vmatprep.mubr.bf16.mxu0 0
  %1398 = vmatmul.mubr.bf16.gmra.mxu0 %v1307
  %v1399 = vpop.f32.mrf.mxu0
  %v1400 = vadd.f32 %v1252, %v1399
  %v1401 = vpop.f32.mrf.mxu0
  %v1402 = vpop.f32.mrf.mxu0
  %v1403 = vadd.f32 %v1257, %v1402
  %v1404 = vpop.f32.mrf.mxu0
  %1405 = vmatprep.mubr.bf16.mxu0 0
  %1406 = vmatmul.mubr.bf16.gmra.mxu0 %v1308
  %v1407 = vpop.f32.mrf.mxu0
  %v1408 = vadd.f32 %v1262, %v1407
  %v1409 = vpop.f32.mrf.mxu0
  %v1410 = vpop.f32.mrf.mxu0
  %v1411 = vadd.f32 %v1267, %v1410
  %v1412 = vpop.f32.mrf.mxu0
  %1413 = vdwg.mxu0
  %v1414 = vmax.f32 %v1352, 0.0
  %v1415 = vmax.f32 %v1355, 0.0
  %v1416 = vmax.f32 %v1360, 0.0
  %v1417 = vmax.f32 %v1363, 0.0
  %v1418 = vmax.f32 %v1368, 0.0
  %v1419 = vmax.f32 %v1371, 0.0
  %v1420 = vmax.f32 %v1376, 0.0
  %v1421 = vmax.f32 %v1379, 0.0
  %v1422 = vmax.f32 %v1384, 0.0
  %v1423 = vmax.f32 %v1387, 0.0
  %v1424 = vmax.f32 %v1392, 0.0
  %v1425 = vmax.f32 %v1395, 0.0
  %v1426 = vmax.f32 %v1400, 0.0
  %v1427 = vmax.f32 %v1403, 0.0
  %v1428 = vmax.f32 %v1408, 0.0
  %v1429 = vmax.f32 %v1411, 0.0
  %v1430 = vld [vmem:[%s10] sm:$0xf]
  %v1431 = vld [vmem:[%s10 + $0x4] sm:$0x1]
  %v1432 = vpack.c.bf16 %v1415, %v1414
  %v1433 = vpack.c.bf16 %v1417, %v1416
  %v1434 = vpack.c.bf16 %v1419, %v1418
  %v1435 = vpack.c.bf16 %v1421, %v1420
  %v1436 = vpack.c.bf16 %v1423, %v1422
  %v1437 = vpack.c.bf16 %v1425, %v1424
  %v1438 = vpack.c.bf16 %v1427, %v1426
  %v1439 = vpack.c.bf16 %v1429, %v1428
  %v1440 = vld [vmem:[%s11] sm:$0xff]
  %v1441 = vld [vmem:[%s11 + $0x8] sm:$0x3]
  %1443 = vset.pattern.permute.xlu0 0
  %1444 = vperm.xlu0 %1443, %v1440
  %v1445 = vpop.permute.xlu0 %1444
  %1448 = vset.pattern.permute.xlu0 0
  %1449 = vperm.xlu0 %1448, %v1441
  %v1450 = vpop.permute.xlu0 %1449
  %v1454 = vunpack.c.l.b16 %v1430
  %v1455 = vunpack.c.l.b16 %v1431
  %v1456 = vpack.c.b16 %v1455, %v1454
  %1458 = vmatprep.subr.bf16.mxu0 0
  %1459 = vmatpush1.bf16.msra.mxu0 %v1439
  %1460 = vmatprep.subr.bf16.mxu0 0
  %1461 = vmatpush1.bf16.msra.mxu0 %v1438
  %1462 = vmatprep.subr.bf16.mxu0 0
  %1463 = vmatpush1.bf16.msra.mxu0 %v1437
  %1464 = vmatprep.subr.bf16.mxu0 0
  %1465 = vmatpush1.bf16.msra.mxu0 %v1436
  %1466 = vmatprep.subr.bf16.mxu0 0
  %1467 = vmatpush1.bf16.msra.mxu0 %v1435
  %1468 = vmatprep.subr.bf16.mxu0 0
  %1469 = vmatpush1.bf16.msra.mxu0 %v1434
  %1470 = vmatprep.subr.bf16.mxu0 0
  %1471 = vmatpush1.bf16.msra.mxu0 %v1433
  %1472 = vmatprep.subr.bf16.mxu0 0
  %1473 = vmatpush1.bf16.msra.mxu0 %v1432
  %1474 = vmatprep.subr.bf16.mxu0 0
  %1475 = vmatpush2.bf16.msra.mxu0 0
  %1476 = vmatprep.subr.bf16.mxu0 0
  %1477 = vmatpush2.bf16.msra.mxu0 0
  %1478 = vmatprep.subr.bf16.mxu0 0
  %1479 = vmatpush2.bf16.msra.mxu0 0
  %1480 = vmatprep.subr.bf16.mxu0 0
  %1481 = vmatpush2.bf16.msra.mxu0 0
  %1482 = vmatprep.subr.bf16.mxu0 0
  %1483 = vmatpush2.bf16.msra.mxu0 0
  %1484 = vmatprep.subr.bf16.mxu0 0
  %1485 = vmatpush2.bf16.msra.mxu0 0
  %1486 = vmatprep.subr.bf16.mxu0 0
  %1487 = vmatpush2.bf16.msra.mxu0 0
  %1488 = vmatprep.subr.bf16.mxu0 0
  %1489 = vmatpush2.bf16.msra.mxu0 0
  %1490 = vmatprep.mubr.bf16.mxu0 0
  %1491 = vmatmul.mubr.bf16.gmra.mxu0 %v1456
  %v1492 = vpop.f32.mrf.mxu0
  %v1493 = vadd.f32 %v1445, %v1492
  %v1494 = vpop.f32.mrf.mxu0
  %v1495 = vpop.f32.mrf.mxu0
  %v1496 = vadd.f32 %v1450, %v1495
  %v1497 = vpop.f32.mrf.mxu0
  %1498 = vdwg.mxu0
  %vm1499 = vcmask 15360
  %1500 = vst.msk [vmem:[%s12] sm:$0xff] %vm1499, %v1493
  %vm1501 = vcmask 9216
  %1502 = vst.msk [vmem:[%s12 + $0x8] sm:$0x3] %vm1501, %v1496
  // Predicated region
  $region50: #{cnn_forward.3} parent=0 // pred_check
    _
  $region51: #{cnn_forward.3} parent=0 // pred_check_branch
    %1504 = sbr.rel (0) target = $region53
  $region52: #{cnn_forward.3} parent=0 // pred_region
    _
  $region53: #{cnn_forward.3} parent=0 // pred_fallthru
    _
  // Predicated region
  $region54: #{cnn_forward.3} parent=0 // pred_check
    _
  $region55: #{cnn_forward.3} parent=0 // pred_check_branch
    %1506 = sbr.rel (0) target = $region57
  $region56: #{cnn_forward.3} parent=0 // pred_region
    _
  $region57: #{cnn_forward.3} parent=0 // pred_fallthru
    _

</llo_original>
